<compile_context>
chip_gen: v7x
topology: tpu7x:2x2x1
jax: 0.10.0
libtpu: 0.0.40
codegen_flags: <defaults>
</compile_context>

<pallas_src>
import functools

import numpy as np
import jax
import jax.numpy as jnp
from jax import lax
from jax.experimental import pallas as pl
from jax.experimental.pallas import tpu as pltpu


def _blur_matrix(n_in: int, n_out: int) -> np.ndarray:
    """(n_in, n_out) matrix: reflect-pad(1) + [1,2,1]/4 blur + stride-2 subsample."""
    taps = np.array([1.0, 2.0, 1.0], np.float64) / 4.0
    m = np.zeros((n_in, n_out), np.float64)
    for o in range(n_out):
        for k in range(3):
            p = 2 * o + k                    # index into the reflect-padded axis
            if p == 0:
                src = 1                      # xp[0]        = x[1]
            elif p == n_in + 1:
                src = n_in - 2               # xp[n_in + 1] = x[n_in - 2]
            else:
                src = p - 1                  # xp[p]        = x[p - 1]
            m[src, o] += taps[k]
    return m.astype(np.float32)


def _blur_downsample_kernel(dw_ref, dht_ref, x_ref, o_ref, *, n_blk, h, w, ho, wo):
    x = x_ref[...]                                      # (n_blk, H, W)
    if x.dtype != dw_ref.dtype:                         # only for exotic dtypes;
        x = x.astype(dw_ref.dtype)                      # f32 / bf16 pass straight through

    # Horizontal [1,2,1]/4 blur + stride-2 (reflect pad folded into dw): one
    # MXU matmul contracting the lane (W) axis.  Leading-dim collapse is a
    # free retile when H % 8 == 0 (true for typical feature maps).
    t = jnp.dot(x.reshape(n_blk * h, w), dw_ref[...],
                preferred_element_type=jnp.float32,
                precision=lax.Precision.HIGHEST)        # (n_blk*H, Wo)
    t = t.reshape(n_blk, h, wo)

    # Vertical pass: batched matmul (dhT broadcast over the plane block)
    # contracting the sublane (H) axis directly -> no transposes / XLU copies.
    dht = jnp.broadcast_to(dht_ref[...], (n_blk, ho, h))
    o = jnp.einsum("noh,nhw->now", dht, t,
                   preferred_element_type=jnp.float32,
                   precision=lax.Precision.HIGHEST)     # (n_blk, Ho, Wo)

    # Lane-dense store: flatten (Ho, Wo) into the minor dim so the output
    # buffer / stores are not lane-padded by 128/Wo.
    o_ref[0] = o.reshape(n_blk, ho * wo).astype(o_ref.dtype)


def _round_up(v: int, m: int) -> int:
    return -(-v // m) * m


def _vmem_bytes_per_plane(h, w, ho, wo, in_itemsize, mm_itemsize, out_itemsize):
    """Approximate per-plane VMEM working set (incl. double-buffered I/O blocks)."""
    hs, hos = _round_up(h, 8), _round_up(ho, 8)
    wl, wol, owol = _round_up(w, 128), _round_up(wo, 128), _round_up(ho * wo, 128)
    total = 2 * hs * wl * in_itemsize                   # input block (double-buffered)
    if mm_itemsize != in_itemsize:
        total += hs * wl * mm_itemsize                  # in-kernel cast copy
    total += hs * wol * 4                               # t (f32)
    total += hos * _round_up(h, 128) * 4                # broadcast dhT (f32)
    total += hos * wol * 4                              # o (f32)
    total += owol * 4                                   # lane-dense relayout of o
    total += 2 * owol * out_itemsize                    # output block (double-buffered)
    return total


def _largest_divisor_leq(n: int, cap: int) -> int:
    cap = max(1, min(n, cap))
    for d in range(cap, 0, -1):
        if n % d == 0:
            return d
    return 1


def downsample(x, *, filt_size=3, stride=2):
    """Equivalent of Downsample(filt_size=3, stride=2, channels=C)(x), x NCHW."""
    assert filt_size == 3 and stride == 2
    B, C, H, W = x.shape
    assert H >= 2 and W >= 2, "reflect padding needs spatial dims >= 2"
    Ho = (H - 1) // 2 + 1
    Wo = (W - 1) // 2 + 1
    N = B * C

    # bf16 stays bf16 into the MXU (taps 0.25 / 0.5 are exact); everything else
    # computes in f32.  Accumulation is always f32.
    mm_dtype = jnp.bfloat16 if x.dtype == jnp.bfloat16 else jnp.float32
    dw = jnp.asarray(_blur_matrix(W, Wo), mm_dtype)             # (W, Wo)
    dht = jnp.asarray(_blur_matrix(H, Ho).T, jnp.float32)       # (Ho, H)

    in_itemsize = jnp.dtype(x.dtype).itemsize
    mm_itemsize = jnp.dtype(mm_dtype).itemsize
    per_plane = _vmem_bytes_per_plane(H, W, Ho, Wo, in_itemsize, mm_itemsize, in_itemsize)

    # Explicit VMEM budget: ~3/4 of physical VMEM (capped at 96 MiB), working
    # set at most half of that -> valid on v5e/v6e (128 MiB) and v7x (64 MiB/TC).
    try:
        vmem_cap = int(getattr(pltpu.get_tpu_info(), "vmem_capacity_bytes", 64 << 20))
    except Exception:
        vmem_cap = 64 << 20
    vmem_limit = min(vmem_cap * 3 // 4, 96 << 20)
    budget = min(vmem_limit // 2, 32 << 20)

    n_max = max(1, budget // per_plane)
    if N >= 4:
        n_max = min(n_max, max(1, N // 4))   # >= 4 grid steps: DMA overlap + megacore
    n_blk = _largest_divisor_leq(N, n_max)   # exact divisor: no wasted padded steps
    G = N // n_blk

    xf = x.reshape(N, H, W)                  # free reshape: fold batch into channels
    kernel = functools.partial(_blur_downsample_kernel,
                               n_blk=n_blk, h=H, w=W, ho=Ho, wo=Wo)

    # MXU MACs actually executed by the two dense passes (not the 9-tap count).
    flops = 2 * N * H * W * Wo + 2 * N * Ho * H * Wo
    bytes_accessed = (N * H * W + N * Ho * Wo) * in_itemsize + (W * Wo + Ho * H) * 4

    out = pl.pallas_call(
        kernel,
        out_shape=jax.ShapeDtypeStruct((G, n_blk, Ho * Wo), x.dtype),
        grid_spec=pltpu.PrefetchScalarGridSpec(
            num_scalar_prefetch=0,
            grid=(G,),
            in_specs=[
                # Constant blocks: block index never changes -> DMA'd once.
                pl.BlockSpec((W, Wo), lambda i: (0, 0)),
                pl.BlockSpec((Ho, H), lambda i: (0, 0)),
                pl.BlockSpec((n_blk, H, W), lambda i: (i, 0, 0)),
            ],
            out_specs=pl.BlockSpec((1, n_blk, Ho * Wo), lambda i: (i, 0, 0)),
        ),
        compiler_params=pltpu.CompilerParams(
            dimension_semantics=("parallel",),
            vmem_limit_bytes=int(vmem_limit),
        ),
        cost_estimate=pl.CostEstimate(
            flops=int(flops), transcendentals=0, bytes_accessed=int(bytes_accessed)),
    )(dw, dht, xf)

    return out.reshape(B, C, Ho, Wo)         # free: contiguous split of trailing dim


def _reference(x):
    """Pure-JAX f32 reference: reflect pad + separable [1,2,1]/4 blur, stride 2."""
    B, C, H, W = x.shape
    Ho = (H - 1) // 2 + 1
    Wo = (W - 1) // 2 + 1
    taps = [0.25, 0.5, 0.25]
    xp = jnp.pad(x.astype(jnp.float32), ((0, 0), (0, 0), (1, 1), (1, 1)),
                 mode="reflect")
    t = sum(taps[k] * xp[:, :, :, k:k + 2 * Wo - 1:2] for k in range(3))
    o = sum(taps[k] * t[:, :, k:k + 2 * Ho - 1:2, :] for k in range(3))
    return o.astype(x.dtype)


if __name__ == "__main__":
    key = jax.random.PRNGKey(0)
    B, C, H, W = 2, 4, 16, 16
    x = jax.random.normal(key, (B, C, H, W), dtype=jnp.float32)

    out = jax.block_until_ready(downsample(x, filt_size=3, stride=2))
    ref = jax.block_until_ready(_reference(x))

    assert out.shape == (B, C, 8, 8), out.shape
    # Tolerance covers MXU bf16-pass rounding of f32 matmuls; algorithmic bugs
    # produce errors orders of magnitude larger.
    assert jnp.allclose(out, ref, atol=1e-2, rtol=1e-2), \
        float(jnp.max(jnp.abs(out.astype(jnp.float32) - ref.astype(jnp.float32))))

    print("KERNEL_OK")
</pallas_src>

<mosaic_0001>
module attributes {stable_mosaic.version = 11 : i64} {
  func.func @_blur_downsample_kernel(%arg0: i32, %arg1: memref<16x8xf32, #tpu.memory_space<vmem>>, %arg2: memref<8x16xf32, #tpu.memory_space<vmem>>, %arg3: memref<2x16x16xf32, #tpu.memory_space<vmem>>, %arg4: memref<1x2x64xf32, #tpu.memory_space<vmem>>) attributes {dimension_semantics = [#tpu.dimension_semantics<parallel>], iteration_bounds = array<i64: 4>, scalar_prefetch = 0 : i64, scratch_operands = 0 : i64, tpu.core_type = #tpu.core_type<tc>, window_params = [{pipeline_mode = #tpu.pipeline_mode<synchronous>, transform_indices = @transform_0, window_bounds = array<i64: 16, 8>}, {pipeline_mode = #tpu.pipeline_mode<synchronous>, transform_indices = @transform_1, window_bounds = array<i64: 8, 16>}, {transform_indices = @transform_2, window_bounds = array<i64: 2, 16, 16>}, {transform_indices = @transform_3, window_bounds = array<i64: 1, 2, 64>}]} {
    %c0 = arith.constant 0 : index
    %c0_0 = arith.constant 0 : index
    %c0_1 = arith.constant 0 : index
    %0 = vector.load %arg3[%c0, %c0_0, %c0_1] : memref<2x16x16xf32, #tpu.memory_space<vmem>>, vector<2x16x16xf32>
    %1 = vector.shape_cast %0 : vector<2x16x16xf32> to vector<32x16xf32>
    %c0_2 = arith.constant 0 : index
    %c0_3 = arith.constant 0 : index
    %2 = vector.load %arg1[%c0_2, %c0_3] : memref<16x8xf32, #tpu.memory_space<vmem>>, vector<16x8xf32>
    %cst = arith.constant dense<0.000000e+00> : vector<32x8xf32>
    %3 = tpu.matmul %1, %2, %cst {dimension_numbers = #tpu.dot_dimension_numbers<[1], [0], [0], [1], [0, 0, 1, 1], [], []>, precision = #tpu.contract_precision<fp32>} : vector<32x16xf32>, vector<16x8xf32>, vector<32x8xf32> -> vector<32x8xf32>
    %4 = vector.shape_cast %3 : vector<32x8xf32> to vector<2x16x8xf32>
    %c0_4 = arith.constant 0 : index
    %c0_5 = arith.constant 0 : index
    %5 = vector.load %arg2[%c0_4, %c0_5] : memref<8x16xf32, #tpu.memory_space<vmem>>, vector<8x16xf32>
    %6 = vector.shape_cast %5 : vector<8x16xf32> to vector<1x8x16xf32>
    %7 = vector.broadcast %6 : vector<1x8x16xf32> to vector<2x8x16xf32>
    "tpu.trace_start"() <{level = 10 : i32, message = "noh,nhw->now"}> : () -> ()
    %cst_6 = arith.constant dense<0.000000e+00> : vector<2x8x8xf32>
    %8 = tpu.matmul %7, %4, %cst_6 {dimension_numbers = #tpu.dot_dimension_numbers<[2], [1], [1], [2], [0, 0, 0, 1, 1, 2], [0], [0]>, precision = #tpu.contract_precision<fp32>} : vector<2x8x16xf32>, vector<2x16x8xf32>, vector<2x8x8xf32> -> vector<2x8x8xf32>
    "tpu.trace_stop"() : () -> ()
    %9 = vector.shape_cast %8 : vector<2x8x8xf32> to vector<2x64xf32>
    %c0_7 = arith.constant 0 : index
    %c0_8 = arith.constant 0 : index
    %c0_9 = arith.constant 0 : index
    %10 = vector.load %arg4[%c0_7, %c0_8, %c0_9] : memref<1x2x64xf32, #tpu.memory_space<vmem>>, vector<1x2x64xf32>
    %11 = vector.shape_cast %10 : vector<1x2x64xf32> to vector<2x64xf32>
    %12 = vector.shape_cast %9 : vector<2x64xf32> to vector<1x2x64xf32>
    tpu.vector_store %arg4[%c0_7, %c0_8, %c0_9], %12 {strides = array<i32>} : memref<1x2x64xf32, #tpu.memory_space<vmem>>, vector<1x2x64xf32>,
    return
  }
  func.func @transform_0(%arg0: i32) -> (i32, i32) {
    %c0_i32 = arith.constant 0 : i32
    %c0_i32_0 = arith.constant 0 : i32
    %c0_i32_1 = arith.constant 0 : i32
    return %c0_i32, %c0_i32_0 : i32, i32
  }
  func.func @transform_1(%arg0: i32) -> (i32, i32) {
    %c0_i32 = arith.constant 0 : i32
    %c0_i32_0 = arith.constant 0 : i32
    %c0_i32_1 = arith.constant 0 : i32
    return %c0_i32, %c0_i32_0 : i32, i32
  }
  func.func @transform_2(%arg0: i32) -> (i32, i32, i32) {
    %c0_i32 = arith.constant 0 : i32
    %c0_i32_0 = arith.constant 0 : i32
    %c0_i32_1 = arith.constant 0 : i32
    return %arg0, %c0_i32, %c0_i32_0 : i32, i32, i32
  }
  func.func @transform_3(%arg0: i32) -> (i32, i32, i32) {
    %c0_i32 = arith.constant 0 : i32
    %c0_i32_0 = arith.constant 0 : i32
    %c0_i32_1 = arith.constant 0 : i32
    return %arg0, %c0_i32, %c0_i32_0 : i32, i32, i32
  }
}

</mosaic_0001>

<llo_original>
// kernel: tpu_custom_call.1
$region0: #{tpu_custom_call.1}
  #allocation0 [shape = 'u32[]', space=smem, size = 0x4, offset = 0x4, fixed_abs, tag = 'smem constant byte address 0x4 - core index']
  #allocation1 [shape = 'u32[144,128]{1,0:T(1,128)}', space=vmem, size = 0x12000, scoped, tag = 'internal scratch']
  %s0 = inlined_call_operand.vmem [shape: f32[16,8], index: 0, kind: input, shape index: {}]
  %s1 = inlined_call_operand.vmem [shape: f32[8,16], index: 1, kind: input, shape index: {}]
  %s2 = inlined_call_operand.hbm [shape: f32[8,16,16], index: 2, kind: input, shape index: {}]
  %s3 = inlined_call_operand.hbm [shape: f32[4,2,64], index: 3, kind: output, shape index: {}]
  %s4 = sld [smem:[#allocation0]]
  $region49: #{tpu_custom_call.1} parent=0
    _
  %s6 = ssub.s32 1, %s4
  %s7 = scalar_select 0, %s6, %s4
  $region1: #{tpu_custom_call.1} parent=0
    #allocation2 [shape = 'u8[32768]{0}', space=vmem, size = 0x8000, scoped, tag = 'input window, operand 2']
    #allocation3 [shape = 's32[2]{0}', space=sflag, size = 0x8, scoped, tag = 'scoped memory for tpu_custom_call.1']
    #allocation4 [shape = 's32[2]{0}', space=sflag, size = 0x8, scoped, tag = 'scoped memory for tpu_custom_call.1']
    #allocation5 [shape = 'u8[2048]{0}', space=vmem, size = 0x800, scoped, tag = 'output window, operand 0']
    %8 = vsyncpa [#allocation3], 0
    %s9 = scalar_lea.sflag [#allocation3], 1
    %10 = vsyncpa %s9, 0
    %11 = vsyncpa [#allocation4], 0
    %s12 = scalar_lea.sflag [#allocation4], 1
    %13 = vsyncpa %s12, 0
    loop: start=0, step=1, limit=6
    $region2: #{tpu_custom_call.1} parent=1 // loop_pre_header
      _
    $region3: #{tpu_custom_call.1} parent=1 // loop_header
      %s15 = sphi 0, %s19
      %p16 = scmp.ge.s32.totalorder %s15, 6
      %s23 = sphi 0, %s23
      %s25 = sphi 0, %s23
      %s26 = sphi 0, %s25
      %s40 = sphi 0, %s26
      %s44 = sphi 0, %s44
      %s46 = sphi 0, %s44
      %s47 = sphi 0, %s46
      %s61 = sphi 0, %s47
      %s67 = sphi 0, %s69
      %s70 = sphi 0, %s67
      %s71 = sphi 0, %s70
      %s87 = sphi 0, %s71
      %s93 = sphi 0, %s95
      %s96 = sphi 0, %s93
      %s97 = sphi 0, %s96
      %s113 = sphi 0, %s97
    $region4: #{tpu_custom_call.1} parent=1 // loop_header_branch
      %18 = sbr.rel (%p16) target = $region8
    $region5: #{tpu_custom_call.1} parent=1 // loop_body
      %s20 = ssub.s32 %s15, 1
      %s21 = ssub.s32 %s15, 2
      %s22 = sadd.s32 %s15, 1
      %s24 = sadd.s32 %s23, 1
      %p27 = scmp.eq.s32.totalorder %s15, 3
      %p28 = scmp.ne.s32.totalorder %s23, %s25
      %p29 = scmp.eq.s32.totalorder %s15, 0
      %p30 = por %p28, %p29
      %p31 = scmp.ne.s32.totalorder %s23, %s25
      %p32 = scmp.eq.s32.totalorder %s20, 3
      %p33 = por %p31, %p32
      %p34 = scmp.ne.s32.totalorder %s25, %s26
      %p35 = scmp.eq.s32.totalorder %s20, 0
      %p36 = por %p34, %p35
      %p37 = scmp.ne.s32.totalorder %s25, %s26
      %p38 = scmp.eq.s32.totalorder %s21, 3
      %p39 = por %p37, %p38
      %p41 = scmp.ne.s32.totalorder %s26, %s40
      %p42 = scmp.eq.s32.totalorder %s21, 0
      %p43 = por %p41, %p42
      %s45 = sadd.s32 %s44, 1
      %p48 = scmp.eq.s32.totalorder %s15, 3
      %p49 = scmp.ne.s32.totalorder %s44, %s46
      %p50 = scmp.eq.s32.totalorder %s15, 0
      %p51 = por %p49, %p50
      %p52 = scmp.ne.s32.totalorder %s44, %s46
      %p53 = scmp.eq.s32.totalorder %s20, 3
      %p54 = por %p52, %p53
      %p55 = scmp.ne.s32.totalorder %s46, %s47
      %p56 = scmp.eq.s32.totalorder %s20, 0
      %p57 = por %p55, %p56
      %p58 = scmp.ne.s32.totalorder %s46, %s47
      %p59 = scmp.eq.s32.totalorder %s21, 3
      %p60 = por %p58, %p59
      %p62 = scmp.ne.s32.totalorder %s47, %s61
      %p63 = scmp.eq.s32.totalorder %s21, 0
      %p64 = por %p62, %p63
      %s65 = ssub.s32 %s15, %s22
      %p66 = scmp.eq.s32.totalorder %s65, 0
      %s68 = sadd.s32 %s67, 1
      %s69 = scalar_select %p66, %s67, %s68
      %p72 = pneg %p66
      %p73 = scmp.eq.s32.totalorder %s15, 3
      %p74 = por %p72, %p73
      %p75 = scmp.ne.s32.totalorder %s67, %s70
      %p76 = scmp.eq.s32.totalorder %s15, 0
      %p77 = por %p75, %p76
      %p78 = scmp.ne.s32.totalorder %s67, %s70
      %p79 = scmp.eq.s32.totalorder %s20, 3
      %p80 = por %p78, %p79
      %p81 = scmp.ne.s32.totalorder %s70, %s71
      %p82 = scmp.eq.s32.totalorder %s20, 0
      %p83 = por %p81, %p82
      %p84 = scmp.ne.s32.totalorder %s70, %s71
      %p85 = scmp.eq.s32.totalorder %s21, 3
      %p86 = por %p84, %p85
      %p88 = scmp.ne.s32.totalorder %s71, %s87
      %p89 = scmp.eq.s32.totalorder %s21, 0
      %p90 = por %p88, %p89
      %s91 = ssub.s32 %s15, %s22
      %p92 = scmp.eq.s32.totalorder %s91, 0
      %s94 = sadd.s32 %s93, 1
      %s95 = scalar_select %p92, %s93, %s94
      %p98 = pneg %p92
      %p99 = scmp.eq.s32.totalorder %s15, 3
      %p100 = por %p98, %p99
      %p101 = scmp.ne.s32.totalorder %s93, %s96
      %p102 = scmp.eq.s32.totalorder %s15, 0
      %p103 = por %p101, %p102
      %p104 = scmp.ne.s32.totalorder %s93, %s96
      %p105 = scmp.eq.s32.totalorder %s20, 3
      %p106 = por %p104, %p105
      %p107 = scmp.ne.s32.totalorder %s96, %s97
      %p108 = scmp.eq.s32.totalorder %s20, 0
      %p109 = por %p107, %p108
      %p110 = scmp.ne.s32.totalorder %s96, %s97
      %p111 = scmp.eq.s32.totalorder %s21, 3
      %p112 = por %p110, %p111
      %p114 = scmp.ne.s32.totalorder %s97, %s113
      %p115 = scmp.eq.s32.totalorder %s21, 0
      %p116 = por %p114, %p115
      %p117 = scmp.le.s32.totalorder 1, %s15
      %p118 = scmp.lt.s32.totalorder %s15, 5
      %p119 = pnand %p117, %p118
      %p120 = pneg %p119
      // Predicated region
      $region9: #{tpu_custom_call.1} parent=5 // pred_check
        _
      $region10: #{tpu_custom_call.1} parent=5 // pred_check_branch
        %122 = sbr.rel (%p119) target = $region12
      $region11: #{tpu_custom_call.1} parent=5 // pred_region
        %s123 = ssub.s32 %s15, 1
        // Predicated region
        $region13: #{tpu_custom_call.1} parent=11 // pred_check
          %p124 = pneg %p36
        $region14: #{tpu_custom_call.1} parent=11 // pred_check_branch
          %126 = sbr.rel (%p124) target = $region16
        $region15: #{tpu_custom_call.1} parent=11 // pred_region
          _
        $region16: #{tpu_custom_call.1} parent=11 // pred_fallthru
          _
        // Predicated region
        $region17: #{tpu_custom_call.1} parent=11 // pred_check
          %p127 = pneg %p57
        $region18: #{tpu_custom_call.1} parent=11 // pred_check_branch
          %129 = sbr.rel (%p127) target = $region20
        $region19: #{tpu_custom_call.1} parent=11 // pred_region
          _
        $region20: #{tpu_custom_call.1} parent=11 // pred_fallthru
          _
      $region12: #{tpu_custom_call.1} parent=5 // pred_fallthru
        _
      %p130 = scmp.lt.s32.totalorder %s15, 4
      // Predicated region
      $region21: #{tpu_custom_call.1} parent=5 // pred_check
        %p131 = pneg %p130
      $region22: #{tpu_custom_call.1} parent=5 // pred_check_branch
        %133 = sbr.rel (%p131) target = $region24
      $region23: #{tpu_custom_call.1} parent=5 // pred_region
        // Predicated region
        $region25: #{tpu_custom_call.1} parent=23 // pred_check
          %p134 = pneg %p77
        $region26: #{tpu_custom_call.1} parent=23 // pred_check_branch
          %136 = sbr.rel (%p134) target = $region28
        $region27: #{tpu_custom_call.1} parent=23 // pred_region
          %s137 = sand.u32 %s67, 1
          %s138 = scalar_lea.sflag [#allocation3], %s137
          %s139 = sand.u32 %s67, 1
          %s140 = smul.addr %s139, 32
          %s141 = scalar_lea.vmem [#allocation2], %s140
          %s142 = smul.u32 2, %s15
          %s144 = ssub.s32 512, 512
          %145 = vsyncadd %s138, %s144
          %s146 = smul.addr %s142, 2
          %s147 = smul.addr %s146, 128
          %s148 = scalar_lea.hbm %s2, %s147
          %s149 = sshll.u32 %s141, 4
          %s150 = int_to_ptr.vmem [resolvable:$true] %s149
          %155 = dma.hbm_to_vmem [thread:$0]  %s148, 512, %s150, %s138, 128, 128, 8
        $region28: #{tpu_custom_call.1} parent=23 // pred_fallthru
          _
      $region24: #{tpu_custom_call.1} parent=5 // pred_fallthru
        _
      %p156 = scmp.le.s32.totalorder 1, %s15
      %p157 = scmp.lt.s32.totalorder %s15, 5
      %p158 = pnand %p156, %p157
      %p159 = pneg %p158
      // Predicated region
      $region29: #{tpu_custom_call.1} parent=5 // pred_check
        _
      $region30: #{tpu_custom_call.1} parent=5 // pred_check_branch
        %161 = sbr.rel (%p158) target = $region32
      $region31: #{tpu_custom_call.1} parent=5 // pred_region
        %s162 = ssub.s32 %s15, 1
        %s163 = sand.u32 %s70, 1
        %s164 = scalar_lea.sflag [#allocation3], %s163
        %s165 = sand.u32 %s70, 1
        %s166 = smul.addr %s165, 32
        %s167 = scalar_lea.vmem [#allocation2], %s166
        // Predicated region
        $region33: #{tpu_custom_call.1} parent=31 // pred_check
          %p168 = pneg %p83
        $region34: #{tpu_custom_call.1} parent=31 // pred_check_branch
          %170 = sbr.rel (%p168) target = $region36
        $region35: #{tpu_custom_call.1} parent=31 // pred_region
          %171 = dma.done %s164, 512
        $region36: #{tpu_custom_call.1} parent=31 // pred_fallthru
          _
        %p172 = pneg %p36
        %p173 = pneg %p33
        %p174 = pneg %p57
        %p175 = pneg %p54
        %s176 = sand.u32 %s70, 1
        %s177 = scalar_lea.sflag [#allocation3], %s176
        %s178 = sand.u32 %s70, 1
        %s179 = smul.addr %s178, 32
        %s180 = scalar_lea.vmem [#allocation2], %s179
        %p181 = pneg %p83
        %p182 = pneg %p80
        %p183 = pneg %p109
        %p184 = pneg %p106
        %s185 = sand.u32 %s96, 1
        %s186 = scalar_lea.sflag [#allocation4], %s185
        %s187 = sand.u32 %s96, 1
        %s188 = smul.addr %s187, 2
        %s189 = scalar_lea.vmem [#allocation5], %s188
        %s190 = smul.u32 2, %s20
        %v191 = vld [vmem:[%s167] sm:$0xff]
        %v192 = vld [vmem:[%s167 + $0x8] sm:$0xff]
        %v193 = vld [vmem:[%s167 + $0x10] sm:$0xff]
        %v194 = vld [vmem:[%s167 + $0x18] sm:$0xff]
        %v195 = vld [vmem:[%s0] sm:$0xff]
        %v196 = vld [vmem:[%s0 + $0x8] sm:$0xff]
        %vm197 = vcmask 130048
        %v199 = vsel %vm197, %v191, 0
        %v202 = vsel %vm197, %v192, 0
        %v205 = vsel %vm197, %v193, 0
        %v208 = vsel %vm197, %v194, 0
        %210 = vmatprep.subr.mxu0 0.0
        %v211 = vand.u32 %v195, 4294901760
        %212 = vmatpush1.msra.mxu0 %v211
        %213 = vmatprep.subr.mxu0 0.0
        %v214 = vand.u32 %v196, 4294901760
        %215 = vmatpush1.msra.mxu0 %v214
        %216 = vmatprep.subr.mxu0 0.0
        %217 = vmatpush1.msra.mxu0 0.0
        %218 = vmatprep.subr.mxu0 0.0
        %219 = vmatpush1.msra.mxu0 0.0
        %220 = vmatprep.subr.mxu0 0.0
        %221 = vmatpush1.msra.mxu0 0.0
        %222 = vmatprep.subr.mxu0 0.0
        %223 = vmatpush1.msra.mxu0 0.0
        %224 = vmatprep.subr.mxu0 0.0
        %225 = vmatpush1.msra.mxu0 0.0
        %226 = vmatprep.subr.mxu0 0.0
        %227 = vmatpush1.msra.mxu0 0.0
        %228 = vmatprep.subr.mxu0 0.0
        %229 = vmatpush1.msra.mxu0 0.0
        %230 = vmatprep.subr.mxu0 0.0
        %231 = vmatpush1.msra.mxu0 0.0
        %232 = vmatprep.subr.mxu0 0.0
        %233 = vmatpush1.msra.mxu0 0.0
        %234 = vmatprep.subr.mxu0 0.0
        %235 = vmatpush1.msra.mxu0 0.0
        %236 = vmatprep.subr.mxu0 0.0
        %237 = vmatpush1.msra.mxu0 0.0
        %238 = vmatprep.subr.mxu0 0.0
        %239 = vmatpush1.msra.mxu0 0.0
        %240 = vmatprep.subr.mxu0 0.0
        %241 = vmatpush1.msra.mxu0 0.0
        %242 = vmatprep.subr.mxu0 0.0
        %243 = vmatpush1.msra.mxu0 0.0
        %244 = vmatprep.subr.mxu0 0.0
        %245 = vmatpush1.msra.mxu0 0.0
        %246 = vmatprep.subr.mxu0 0.0
        %247 = vmatpush1.msra.mxu0 0.0
        %248 = vmatprep.subr.mxu0 0.0
        %249 = vmatpush1.msra.mxu0 0.0
        %250 = vmatprep.subr.mxu0 0.0
        %251 = vmatpush1.msra.mxu0 0.0
        %252 = vmatprep.subr.mxu0 0.0
        %253 = vmatpush1.msra.mxu0 0.0
        %254 = vmatprep.subr.mxu0 0.0
        %255 = vmatpush1.msra.mxu0 0.0
        %256 = vmatprep.subr.mxu0 0.0
        %257 = vmatpush1.msra.mxu0 0.0
        %258 = vmatprep.subr.mxu0 0.0
        %259 = vmatpush1.msra.mxu0 0.0
        %260 = vmatprep.subr.mxu0 0.0
        %261 = vmatpush1.msra.mxu0 0.0
        %262 = vmatprep.subr.mxu0 0.0
        %263 = vmatpush1.msra.mxu0 0.0
        %264 = vmatprep.subr.mxu0 0.0
        %265 = vmatpush1.msra.mxu0 0.0
        %266 = vmatprep.subr.mxu0 0.0
        %267 = vmatpush1.msra.mxu0 0.0
        %268 = vmatprep.subr.mxu0 0.0
        %269 = vmatpush1.msra.mxu0 0.0
        %270 = vmatprep.subr.mxu0 0.0
        %271 = vmatpush1.msra.mxu0 0.0
        %272 = vmatprep.subr.mxu0 0.0
        %273 = vmatpush1.msra.mxu0 0.0
        %274 = vmatprep.subr.mxu0 0.0
        %275 = vmatpush1.msra.mxu0 0.0
        %276 = vmatprep.mubr.f32.mxu0 0.0
        %v277 = vand.u32 %v199, 4294901760
        %v278 = vsub.f32 %v199, %v277
        %v279 = vand.u32 %v278, 4294901760
        %v280 = vsub.f32 %v278, %v279
        %v281 = vand.u32 %v280, 4294901760
        %282 = vmatmul.mubr.f32.gmra.mrb[0].mxu0 %v281
        %v283 = vpop.f32.mrb[0].mxu0
        %v284 = vadd.f32 0.0, %v283
        %v285 = vpop.f32.mrb[0].mxu0
        %286 = vmatprep.mubr.f32.mxu0 0.0
        %v287 = vand.u32 %v202, 4294901760
        %v288 = vsub.f32 %v202, %v287
        %v289 = vand.u32 %v288, 4294901760
        %v290 = vsub.f32 %v288, %v289
        %v291 = vand.u32 %v290, 4294901760
        %292 = vmatmul.mubr.f32.gmra.mrb[0].mxu0 %v291
        %v293 = vpop.f32.mrb[0].mxu0
        %v294 = vadd.f32 0.0, %v293
        %v295 = vpop.f32.mrb[0].mxu0
        %296 = vmatprep.mubr.f32.mxu0 0.0
        %v297 = vand.u32 %v205, 4294901760
        %v298 = vsub.f32 %v205, %v297
        %v299 = vand.u32 %v298, 4294901760
        %v300 = vsub.f32 %v298, %v299
        %v301 = vand.u32 %v300, 4294901760
        %302 = vmatmul.mubr.f32.gmra.mrb[0].mxu0 %v301
        %v303 = vpop.f32.mrb[0].mxu0
        %v304 = vadd.f32 0.0, %v303
        %v305 = vpop.f32.mrb[0].mxu0
        %306 = vmatprep.mubr.f32.mxu0 0.0
        %v307 = vand.u32 %v208, 4294901760
        %v308 = vsub.f32 %v208, %v307
        %v309 = vand.u32 %v308, 4294901760
        %v310 = vsub.f32 %v308, %v309
        %v311 = vand.u32 %v310, 4294901760
        %312 = vmatmul.mubr.f32.gmra.mrb[0].mxu0 %v311
        %v313 = vpop.f32.mrb[0].mxu0
        %v314 = vadd.f32 0.0, %v313
        %v315 = vpop.f32.mrb[0].mxu0
        %316 = vdwg.mxu0
        %317 = vmatprep.subr.mxu0 0.0
        %v318 = vand.u32 %v195, 4294901760
        %v319 = vsub.f32 %v195, %v318
        %v320 = vand.u32 %v319, 4294901760
        %v321 = vsub.f32 %v319, %v320
        %v322 = vand.u32 %v321, 4294901760
        %323 = vmatpush1.msra.mxu0 %v322
        %324 = vmatprep.subr.mxu0 0.0
        %v325 = vand.u32 %v196, 4294901760
        %v326 = vsub.f32 %v196, %v325
        %v327 = vand.u32 %v326, 4294901760
        %v328 = vsub.f32 %v326, %v327
        %v329 = vand.u32 %v328, 4294901760
        %330 = vmatpush1.msra.mxu0 %v329
        %331 = vmatprep.subr.mxu0 0.0
        %332 = vmatpush1.msra.mxu0 0.0
        %333 = vmatprep.subr.mxu0 0.0
        %334 = vmatpush1.msra.mxu0 0.0
        %335 = vmatprep.subr.mxu0 0.0
        %336 = vmatpush1.msra.mxu0 0.0
        %337 = vmatprep.subr.mxu0 0.0
        %338 = vmatpush1.msra.mxu0 0.0
        %339 = vmatprep.subr.mxu0 0.0
        %340 = vmatpush1.msra.mxu0 0.0
        %341 = vmatprep.subr.mxu0 0.0
        %342 = vmatpush1.msra.mxu0 0.0
        %343 = vmatprep.subr.mxu0 0.0
        %344 = vmatpush1.msra.mxu0 0.0
        %345 = vmatprep.subr.mxu0 0.0
        %346 = vmatpush1.msra.mxu0 0.0
        %347 = vmatprep.subr.mxu0 0.0
        %348 = vmatpush1.msra.mxu0 0.0
        %349 = vmatprep.subr.mxu0 0.0
        %350 = vmatpush1.msra.mxu0 0.0
        %351 = vmatprep.subr.mxu0 0.0
        %352 = vmatpush1.msra.mxu0 0.0
        %353 = vmatprep.subr.mxu0 0.0
        %354 = vmatpush1.msra.mxu0 0.0
        %355 = vmatprep.subr.mxu0 0.0
        %356 = vmatpush1.msra.mxu0 0.0
        %357 = vmatprep.subr.mxu0 0.0
        %358 = vmatpush1.msra.mxu0 0.0
        %359 = vmatprep.subr.mxu0 0.0
        %360 = vmatpush1.msra.mxu0 0.0
        %361 = vmatprep.subr.mxu0 0.0
        %362 = vmatpush1.msra.mxu0 0.0
        %363 = vmatprep.subr.mxu0 0.0
        %364 = vmatpush1.msra.mxu0 0.0
        %365 = vmatprep.subr.mxu0 0.0
        %366 = vmatpush1.msra.mxu0 0.0
        %367 = vmatprep.subr.mxu0 0.0
        %368 = vmatpush1.msra.mxu0 0.0
        %369 = vmatprep.subr.mxu0 0.0
        %370 = vmatpush1.msra.mxu0 0.0
        %371 = vmatprep.subr.mxu0 0.0
        %372 = vmatpush1.msra.mxu0 0.0
        %373 = vmatprep.subr.mxu0 0.0
        %374 = vmatpush1.msra.mxu0 0.0
        %375 = vmatprep.subr.mxu0 0.0
        %376 = vmatpush1.msra.mxu0 0.0
        %377 = vmatprep.subr.mxu0 0.0
        %378 = vmatpush1.msra.mxu0 0.0
        %379 = vmatprep.subr.mxu0 0.0
        %380 = vmatpush1.msra.mxu0 0.0
        %381 = vmatprep.subr.mxu0 0.0
        %382 = vmatpush1.msra.mxu0 0.0
        %383 = vmatprep.subr.mxu0 0.0
        %384 = vmatpush1.msra.mxu0 0.0
        %385 = vmatprep.subr.mxu0 0.0
        %386 = vmatpush1.msra.mxu0 0.0
        %387 = vmatprep.subr.mxu0 0.0
        %388 = vmatpush1.msra.mxu0 0.0
        %389 = vmatprep.subr.mxu0 0.0
        %390 = vmatpush1.msra.mxu0 0.0
        %391 = vmatprep.mubr.f32.mxu0 0.0
        %v392 = vand.u32 %v199, 4294901760
        %393 = vmatmul.mubr.f32.gmra.mrb[0].mxu0 %v392
        %v394 = vpop.f32.mrb[0].mxu0
        %v395 = vadd.f32 %v284, %v394
        %v396 = vpop.f32.mrb[0].mxu0
        %397 = vmatprep.mubr.f32.mxu0 0.0
        %v398 = vand.u32 %v202, 4294901760
        %399 = vmatmul.mubr.f32.gmra.mrb[0].mxu0 %v398
        %v400 = vpop.f32.mrb[0].mxu0
        %v401 = vadd.f32 %v294, %v400
        %v402 = vpop.f32.mrb[0].mxu0
        %403 = vmatprep.mubr.f32.mxu0 0.0
        %v404 = vand.u32 %v205, 4294901760
        %405 = vmatmul.mubr.f32.gmra.mrb[0].mxu0 %v404
        %v406 = vpop.f32.mrb[0].mxu0
        %v407 = vadd.f32 %v304, %v406
        %v408 = vpop.f32.mrb[0].mxu0
        %409 = vmatprep.mubr.f32.mxu0 0.0
        %v410 = vand.u32 %v208, 4294901760
        %411 = vmatmul.mubr.f32.gmra.mrb[0].mxu0 %v410
        %v412 = vpop.f32.mrb[0].mxu0
        %v413 = vadd.f32 %v314, %v412
        %v414 = vpop.f32.mrb[0].mxu0
        %415 = vdwg.mxu0
        %416 = vmatprep.subr.mxu0 0.0
        %v417 = vand.u32 %v195, 4294901760
        %v418 = vsub.f32 %v195, %v417
        %419 = vmatpush1.msra.mxu0 %v418
        %420 = vmatprep.subr.mxu0 0.0
        %v421 = vand.u32 %v196, 4294901760
        %v422 = vsub.f32 %v196, %v421
        %423 = vmatpush1.msra.mxu0 %v422
        %424 = vmatprep.subr.mxu0 0.0
        %425 = vmatpush1.msra.mxu0 0.0
        %426 = vmatprep.subr.mxu0 0.0
        %427 = vmatpush1.msra.mxu0 0.0
        %428 = vmatprep.subr.mxu0 0.0
        %429 = vmatpush1.msra.mxu0 0.0
        %430 = vmatprep.subr.mxu0 0.0
        %431 = vmatpush1.msra.mxu0 0.0
        %432 = vmatprep.subr.mxu0 0.0
        %433 = vmatpush1.msra.mxu0 0.0
        %434 = vmatprep.subr.mxu0 0.0
        %435 = vmatpush1.msra.mxu0 0.0
        %436 = vmatprep.subr.mxu0 0.0
        %437 = vmatpush1.msra.mxu0 0.0
        %438 = vmatprep.subr.mxu0 0.0
        %439 = vmatpush1.msra.mxu0 0.0
        %440 = vmatprep.subr.mxu0 0.0
        %441 = vmatpush1.msra.mxu0 0.0
        %442 = vmatprep.subr.mxu0 0.0
        %443 = vmatpush1.msra.mxu0 0.0
        %444 = vmatprep.subr.mxu0 0.0
        %445 = vmatpush1.msra.mxu0 0.0
        %446 = vmatprep.subr.mxu0 0.0
        %447 = vmatpush1.msra.mxu0 0.0
        %448 = vmatprep.subr.mxu0 0.0
        %449 = vmatpush1.msra.mxu0 0.0
        %450 = vmatprep.subr.mxu0 0.0
        %451 = vmatpush1.msra.mxu0 0.0
        %452 = vmatprep.subr.mxu0 0.0
        %453 = vmatpush1.msra.mxu0 0.0
        %454 = vmatprep.subr.mxu0 0.0
        %455 = vmatpush1.msra.mxu0 0.0
        %456 = vmatprep.subr.mxu0 0.0
        %457 = vmatpush1.msra.mxu0 0.0
        %458 = vmatprep.subr.mxu0 0.0
        %459 = vmatpush1.msra.mxu0 0.0
        %460 = vmatprep.subr.mxu0 0.0
        %461 = vmatpush1.msra.mxu0 0.0
        %462 = vmatprep.subr.mxu0 0.0
        %463 = vmatpush1.msra.mxu0 0.0
        %464 = vmatprep.subr.mxu0 0.0
        %465 = vmatpush1.msra.mxu0 0.0
        %466 = vmatprep.subr.mxu0 0.0
        %467 = vmatpush1.msra.mxu0 0.0
        %468 = vmatprep.subr.mxu0 0.0
        %469 = vmatpush1.msra.mxu0 0.0
        %470 = vmatprep.subr.mxu0 0.0
        %471 = vmatpush1.msra.mxu0 0.0
        %472 = vmatprep.subr.mxu0 0.0
        %473 = vmatpush1.msra.mxu0 0.0
        %474 = vmatprep.subr.mxu0 0.0
        %475 = vmatpush1.msra.mxu0 0.0
        %476 = vmatprep.subr.mxu0 0.0
        %477 = vmatpush1.msra.mxu0 0.0
        %478 = vmatprep.subr.mxu0 0.0
        %479 = vmatpush1.msra.mxu0 0.0
        %480 = vmatprep.subr.mxu0 0.0
        %481 = vmatpush1.msra.mxu0 0.0
        %482 = vmatprep.subr.mxu0 0.0
        %483 = vmatpush1.msra.mxu0 0.0
        %484 = vmatprep.mubr.f32.mxu0 0.0
        %v485 = vand.u32 %v199, 4294901760
        %v486 = vsub.f32 %v199, %v485
        %487 = vmatmul.mubr.f32.gmra.mrb[0].mxu0 %v486
        %v488 = vpop.f32.mrb[0].mxu0
        %v489 = vadd.f32 %v395, %v488
        %v490 = vpop.f32.mrb[0].mxu0
        %491 = vmatprep.mubr.f32.mxu0 0.0
        %v492 = vand.u32 %v202, 4294901760
        %v493 = vsub.f32 %v202, %v492
        %494 = vmatmul.mubr.f32.gmra.mrb[0].mxu0 %v493
        %v495 = vpop.f32.mrb[0].mxu0
        %v496 = vadd.f32 %v401, %v495
        %v497 = vpop.f32.mrb[0].mxu0
        %498 = vmatprep.mubr.f32.mxu0 0.0
        %v499 = vand.u32 %v205, 4294901760
        %v500 = vsub.f32 %v205, %v499
        %501 = vmatmul.mubr.f32.gmra.mrb[0].mxu0 %v500
        %v502 = vpop.f32.mrb[0].mxu0
        %v503 = vadd.f32 %v407, %v502
        %v504 = vpop.f32.mrb[0].mxu0
        %505 = vmatprep.mubr.f32.mxu0 0.0
        %v506 = vand.u32 %v208, 4294901760
        %v507 = vsub.f32 %v208, %v506
        %508 = vmatmul.mubr.f32.gmra.mrb[0].mxu0 %v507
        %v509 = vpop.f32.mrb[0].mxu0
        %v510 = vadd.f32 %v413, %v509
        %v511 = vpop.f32.mrb[0].mxu0
        %512 = vdwg.mxu0
        %513 = vmatprep.subr.mxu0 0.0
        %v514 = vand.u32 %v195, 4294901760
        %515 = vmatpush1.msra.mxu0 %v514
        %516 = vmatprep.subr.mxu0 0.0
        %v517 = vand.u32 %v196, 4294901760
        %518 = vmatpush1.msra.mxu0 %v517
        %519 = vmatprep.subr.mxu0 0.0
        %520 = vmatpush1.msra.mxu0 0.0
        %521 = vmatprep.subr.mxu0 0.0
        %522 = vmatpush1.msra.mxu0 0.0
        %523 = vmatprep.subr.mxu0 0.0
        %524 = vmatpush1.msra.mxu0 0.0
        %525 = vmatprep.subr.mxu0 0.0
        %526 = vmatpush1.msra.mxu0 0.0
        %527 = vmatprep.subr.mxu0 0.0
        %528 = vmatpush1.msra.mxu0 0.0
        %529 = vmatprep.subr.mxu0 0.0
        %530 = vmatpush1.msra.mxu0 0.0
        %531 = vmatprep.subr.mxu0 0.0
        %532 = vmatpush1.msra.mxu0 0.0
        %533 = vmatprep.subr.mxu0 0.0
        %534 = vmatpush1.msra.mxu0 0.0
        %535 = vmatprep.subr.mxu0 0.0
        %536 = vmatpush1.msra.mxu0 0.0
        %537 = vmatprep.subr.mxu0 0.0
        %538 = vmatpush1.msra.mxu0 0.0
        %539 = vmatprep.subr.mxu0 0.0
        %540 = vmatpush1.msra.mxu0 0.0
        %541 = vmatprep.subr.mxu0 0.0
        %542 = vmatpush1.msra.mxu0 0.0
        %543 = vmatprep.subr.mxu0 0.0
        %544 = vmatpush1.msra.mxu0 0.0
        %545 = vmatprep.subr.mxu0 0.0
        %546 = vmatpush1.msra.mxu0 0.0
        %547 = vmatprep.subr.mxu0 0.0
        %548 = vmatpush1.msra.mxu0 0.0
        %549 = vmatprep.subr.mxu0 0.0
        %550 = vmatpush1.msra.mxu0 0.0
        %551 = vmatprep.subr.mxu0 0.0
        %552 = vmatpush1.msra.mxu0 0.0
        %553 = vmatprep.subr.mxu0 0.0
        %554 = vmatpush1.msra.mxu0 0.0
        %555 = vmatprep.subr.mxu0 0.0
        %556 = vmatpush1.msra.mxu0 0.0
        %557 = vmatprep.subr.mxu0 0.0
        %558 = vmatpush1.msra.mxu0 0.0
        %559 = vmatprep.subr.mxu0 0.0
        %560 = vmatpush1.msra.mxu0 0.0
        %561 = vmatprep.subr.mxu0 0.0
        %562 = vmatpush1.msra.mxu0 0.0
        %563 = vmatprep.subr.mxu0 0.0
        %564 = vmatpush1.msra.mxu0 0.0
        %565 = vmatprep.subr.mxu0 0.0
        %566 = vmatpush1.msra.mxu0 0.0
        %567 = vmatprep.subr.mxu0 0.0
        %568 = vmatpush1.msra.mxu0 0.0
        %569 = vmatprep.subr.mxu0 0.0
        %570 = vmatpush1.msra.mxu0 0.0
        %571 = vmatprep.subr.mxu0 0.0
        %572 = vmatpush1.msra.mxu0 0.0
        %573 = vmatprep.subr.mxu0 0.0
        %574 = vmatpush1.msra.mxu0 0.0
        %575 = vmatprep.subr.mxu0 0.0
        %576 = vmatpush1.msra.mxu0 0.0
        %577 = vmatprep.subr.mxu0 0.0
        %578 = vmatpush1.msra.mxu0 0.0
        %579 = vmatprep.mubr.f32.mxu0 0.0
        %v580 = vand.u32 %v199, 4294901760
        %v581 = vsub.f32 %v199, %v580
        %v582 = vand.u32 %v581, 4294901760
        %583 = vmatmul.mubr.f32.gmra.mrb[0].mxu0 %v582
        %v584 = vpop.f32.mrb[0].mxu0
        %v585 = vadd.f32 %v489, %v584
        %v586 = vpop.f32.mrb[0].mxu0
        %587 = vmatprep.mubr.f32.mxu0 0.0
        %v588 = vand.u32 %v202, 4294901760
        %v589 = vsub.f32 %v202, %v588
        %v590 = vand.u32 %v589, 4294901760
        %591 = vmatmul.mubr.f32.gmra.mrb[0].mxu0 %v590
        %v592 = vpop.f32.mrb[0].mxu0
        %v593 = vadd.f32 %v496, %v592
        %v594 = vpop.f32.mrb[0].mxu0
        %595 = vmatprep.mubr.f32.mxu0 0.0
        %v596 = vand.u32 %v205, 4294901760
        %v597 = vsub.f32 %v205, %v596
        %v598 = vand.u32 %v597, 4294901760
        %599 = vmatmul.mubr.f32.gmra.mrb[0].mxu0 %v598
        %v600 = vpop.f32.mrb[0].mxu0
        %v601 = vadd.f32 %v503, %v600
        %v602 = vpop.f32.mrb[0].mxu0
        %603 = vmatprep.mubr.f32.mxu0 0.0
        %v604 = vand.u32 %v208, 4294901760
        %v605 = vsub.f32 %v208, %v604
        %v606 = vand.u32 %v605, 4294901760
        %607 = vmatmul.mubr.f32.gmra.mrb[0].mxu0 %v606
        %v608 = vpop.f32.mrb[0].mxu0
        %v609 = vadd.f32 %v510, %v608
        %v610 = vpop.f32.mrb[0].mxu0
        %611 = vdwg.mxu0
        %612 = vmatprep.subr.mxu0 0.0
        %v613 = vand.u32 %v195, 4294901760
        %v614 = vsub.f32 %v195, %v613
        %v615 = vand.u32 %v614, 4294901760
        %616 = vmatpush1.msra.mxu0 %v615
        %617 = vmatprep.subr.mxu0 0.0
        %v618 = vand.u32 %v196, 4294901760
        %v619 = vsub.f32 %v196, %v618
        %v620 = vand.u32 %v619, 4294901760
        %621 = vmatpush1.msra.mxu0 %v620
        %622 = vmatprep.subr.mxu0 0.0
        %623 = vmatpush1.msra.mxu0 0.0
        %624 = vmatprep.subr.mxu0 0.0
        %625 = vmatpush1.msra.mxu0 0.0
        %626 = vmatprep.subr.mxu0 0.0
        %627 = vmatpush1.msra.mxu0 0.0
        %628 = vmatprep.subr.mxu0 0.0
        %629 = vmatpush1.msra.mxu0 0.0
        %630 = vmatprep.subr.mxu0 0.0
        %631 = vmatpush1.msra.mxu0 0.0
        %632 = vmatprep.subr.mxu0 0.0
        %633 = vmatpush1.msra.mxu0 0.0
        %634 = vmatprep.subr.mxu0 0.0
        %635 = vmatpush1.msra.mxu0 0.0
        %636 = vmatprep.subr.mxu0 0.0
        %637 = vmatpush1.msra.mxu0 0.0
        %638 = vmatprep.subr.mxu0 0.0
        %639 = vmatpush1.msra.mxu0 0.0
        %640 = vmatprep.subr.mxu0 0.0
        %641 = vmatpush1.msra.mxu0 0.0
        %642 = vmatprep.subr.mxu0 0.0
        %643 = vmatpush1.msra.mxu0 0.0
        %644 = vmatprep.subr.mxu0 0.0
        %645 = vmatpush1.msra.mxu0 0.0
        %646 = vmatprep.subr.mxu0 0.0
        %647 = vmatpush1.msra.mxu0 0.0
        %648 = vmatprep.subr.mxu0 0.0
        %649 = vmatpush1.msra.mxu0 0.0
        %650 = vmatprep.subr.mxu0 0.0
        %651 = vmatpush1.msra.mxu0 0.0
        %652 = vmatprep.subr.mxu0 0.0
        %653 = vmatpush1.msra.mxu0 0.0
        %654 = vmatprep.subr.mxu0 0.0
        %655 = vmatpush1.msra.mxu0 0.0
        %656 = vmatprep.subr.mxu0 0.0
        %657 = vmatpush1.msra.mxu0 0.0
        %658 = vmatprep.subr.mxu0 0.0
        %659 = vmatpush1.msra.mxu0 0.0
        %660 = vmatprep.subr.mxu0 0.0
        %661 = vmatpush1.msra.mxu0 0.0
        %662 = vmatprep.subr.mxu0 0.0
        %663 = vmatpush1.msra.mxu0 0.0
        %664 = vmatprep.subr.mxu0 0.0
        %665 = vmatpush1.msra.mxu0 0.0
        %666 = vmatprep.subr.mxu0 0.0
        %667 = vmatpush1.msra.mxu0 0.0
        %668 = vmatprep.subr.mxu0 0.0
        %669 = vmatpush1.msra.mxu0 0.0
        %670 = vmatprep.subr.mxu0 0.0
        %671 = vmatpush1.msra.mxu0 0.0
        %672 = vmatprep.subr.mxu0 0.0
        %673 = vmatpush1.msra.mxu0 0.0
        %674 = vmatprep.subr.mxu0 0.0
        %675 = vmatpush1.msra.mxu0 0.0
        %676 = vmatprep.subr.mxu0 0.0
        %677 = vmatpush1.msra.mxu0 0.0
        %678 = vmatprep.subr.mxu0 0.0
        %679 = vmatpush1.msra.mxu0 0.0
        %680 = vmatprep.subr.mxu0 0.0
        %681 = vmatpush1.msra.mxu0 0.0
        %682 = vmatprep.mubr.f32.mxu0 0.0
        %v683 = vand.u32 %v199, 4294901760
        %684 = vmatmul.mubr.f32.gmra.mrb[0].mxu0 %v683
        %v685 = vpop.f32.mrb[0].mxu0
        %v686 = vadd.f32 %v585, %v685
        %v687 = vpop.f32.mrb[0].mxu0
        %688 = vmatprep.mubr.f32.mxu0 0.0
        %v689 = vand.u32 %v202, 4294901760
        %690 = vmatmul.mubr.f32.gmra.mrb[0].mxu0 %v689
        %v691 = vpop.f32.mrb[0].mxu0
        %v692 = vadd.f32 %v593, %v691
        %v693 = vpop.f32.mrb[0].mxu0
        %694 = vmatprep.mubr.f32.mxu0 0.0
        %v695 = vand.u32 %v205, 4294901760
        %696 = vmatmul.mubr.f32.gmra.mrb[0].mxu0 %v695
        %v697 = vpop.f32.mrb[0].mxu0
        %v698 = vadd.f32 %v601, %v697
        %v699 = vpop.f32.mrb[0].mxu0
        %700 = vmatprep.mubr.f32.mxu0 0.0
        %v701 = vand.u32 %v208, 4294901760
        %702 = vmatmul.mubr.f32.gmra.mrb[0].mxu0 %v701
        %v703 = vpop.f32.mrb[0].mxu0
        %v704 = vadd.f32 %v609, %v703
        %v705 = vpop.f32.mrb[0].mxu0
        %706 = vdwg.mxu0
        %707 = vmatprep.subr.mxu0 0.0
        %v708 = vand.u32 %v195, 4294901760
        %709 = vmatpush1.msra.mxu0 %v708
        %710 = vmatprep.subr.mxu0 0.0
        %v711 = vand.u32 %v196, 4294901760
        %712 = vmatpush1.msra.mxu0 %v711
        %713 = vmatprep.subr.mxu0 0.0
        %714 = vmatpush1.msra.mxu0 0.0
        %715 = vmatprep.subr.mxu0 0.0
        %716 = vmatpush1.msra.mxu0 0.0
        %717 = vmatprep.subr.mxu0 0.0
        %718 = vmatpush1.msra.mxu0 0.0
        %719 = vmatprep.subr.mxu0 0.0
        %720 = vmatpush1.msra.mxu0 0.0
        %721 = vmatprep.subr.mxu0 0.0
        %722 = vmatpush1.msra.mxu0 0.0
        %723 = vmatprep.subr.mxu0 0.0
        %724 = vmatpush1.msra.mxu0 0.0
        %725 = vmatprep.subr.mxu0 0.0
        %726 = vmatpush1.msra.mxu0 0.0
        %727 = vmatprep.subr.mxu0 0.0
        %728 = vmatpush1.msra.mxu0 0.0
        %729 = vmatprep.subr.mxu0 0.0
        %730 = vmatpush1.msra.mxu0 0.0
        %731 = vmatprep.subr.mxu0 0.0
        %732 = vmatpush1.msra.mxu0 0.0
        %733 = vmatprep.subr.mxu0 0.0
        %734 = vmatpush1.msra.mxu0 0.0
        %735 = vmatprep.subr.mxu0 0.0
        %736 = vmatpush1.msra.mxu0 0.0
        %737 = vmatprep.subr.mxu0 0.0
        %738 = vmatpush1.msra.mxu0 0.0
        %739 = vmatprep.subr.mxu0 0.0
        %740 = vmatpush1.msra.mxu0 0.0
        %741 = vmatprep.subr.mxu0 0.0
        %742 = vmatpush1.msra.mxu0 0.0
        %743 = vmatprep.subr.mxu0 0.0
        %744 = vmatpush1.msra.mxu0 0.0
        %745 = vmatprep.subr.mxu0 0.0
        %746 = vmatpush1.msra.mxu0 0.0
        %747 = vmatprep.subr.mxu0 0.0
        %748 = vmatpush1.msra.mxu0 0.0
        %749 = vmatprep.subr.mxu0 0.0
        %750 = vmatpush1.msra.mxu0 0.0
        %751 = vmatprep.subr.mxu0 0.0
        %752 = vmatpush1.msra.mxu0 0.0
        %753 = vmatprep.subr.mxu0 0.0
        %754 = vmatpush1.msra.mxu0 0.0
        %755 = vmatprep.subr.mxu0 0.0
        %756 = vmatpush1.msra.mxu0 0.0
        %757 = vmatprep.subr.mxu0 0.0
        %758 = vmatpush1.msra.mxu0 0.0
        %759 = vmatprep.subr.mxu0 0.0
        %760 = vmatpush1.msra.mxu0 0.0
        %761 = vmatprep.subr.mxu0 0.0
        %762 = vmatpush1.msra.mxu0 0.0
        %763 = vmatprep.subr.mxu0 0.0
        %764 = vmatpush1.msra.mxu0 0.0
        %765 = vmatprep.subr.mxu0 0.0
        %766 = vmatpush1.msra.mxu0 0.0
        %767 = vmatprep.subr.mxu0 0.0
        %768 = vmatpush1.msra.mxu0 0.0
        %769 = vmatprep.subr.mxu0 0.0
        %770 = vmatpush1.msra.mxu0 0.0
        %771 = vmatprep.subr.mxu0 0.0
        %772 = vmatpush1.msra.mxu0 0.0
        %773 = vmatprep.mubr.f32.mxu0 0.0
        %v774 = vand.u32 %v199, 4294901760
        %775 = vmatmul.mubr.f32.gmra.mrb[0].mxu0 %v774
        %v776 = vpop.f32.mrb[0].mxu0
        %v777 = vadd.f32 %v686, %v776
        %v778 = vpop.f32.mrb[0].mxu0
        %779 = vmatprep.mubr.f32.mxu0 0.0
        %v780 = vand.u32 %v202, 4294901760
        %781 = vmatmul.mubr.f32.gmra.mrb[0].mxu0 %v780
        %v782 = vpop.f32.mrb[0].mxu0
        %v783 = vadd.f32 %v692, %v782
        %v784 = vpop.f32.mrb[0].mxu0
        %785 = vmatprep.mubr.f32.mxu0 0.0
        %v786 = vand.u32 %v205, 4294901760
        %787 = vmatmul.mubr.f32.gmra.mrb[0].mxu0 %v786
        %v788 = vpop.f32.mrb[0].mxu0
        %v789 = vadd.f32 %v698, %v788
        %v790 = vpop.f32.mrb[0].mxu0
        %791 = vmatprep.mubr.f32.mxu0 0.0
        %v792 = vand.u32 %v208, 4294901760
        %793 = vmatmul.mubr.f32.gmra.mrb[0].mxu0 %v792
        %v794 = vpop.f32.mrb[0].mxu0
        %v795 = vadd.f32 %v704, %v794
        %v796 = vpop.f32.mrb[0].mxu0
        %797 = vdwg.mxu0
        %v798 = vld [vmem:[%s1] sm:$0xff]
        %v800 = vsel %vm197, %v798, 0
        %802 = vmatprep.subr.mxu0 0.0
        %v803 = vand.u32 %v777, 4294901760
        %804 = vmatpush1.msra.mxu0 %v803
        %805 = vmatprep.subr.mxu0 0.0
        %v806 = vand.u32 %v783, 4294901760
        %807 = vmatpush1.msra.mxu0 %v806
        %808 = vmatprep.subr.mxu0 0.0
        %809 = vmatpush1.msra.mxu0 0.0
        %810 = vmatprep.subr.mxu0 0.0
        %811 = vmatpush1.msra.mxu0 0.0
        %812 = vmatprep.subr.mxu0 0.0
        %813 = vmatpush1.msra.mxu0 0.0
        %814 = vmatprep.subr.mxu0 0.0
        %815 = vmatpush1.msra.mxu0 0.0
        %816 = vmatprep.subr.mxu0 0.0
        %817 = vmatpush1.msra.mxu0 0.0
        %818 = vmatprep.subr.mxu0 0.0
        %819 = vmatpush1.msra.mxu0 0.0
        %820 = vmatprep.subr.mxu0 0.0
        %821 = vmatpush1.msra.mxu0 0.0
        %822 = vmatprep.subr.mxu0 0.0
        %823 = vmatpush1.msra.mxu0 0.0
        %824 = vmatprep.subr.mxu0 0.0
        %825 = vmatpush1.msra.mxu0 0.0
        %826 = vmatprep.subr.mxu0 0.0
        %827 = vmatpush1.msra.mxu0 0.0
        %828 = vmatprep.subr.mxu0 0.0
        %829 = vmatpush1.msra.mxu0 0.0
        %830 = vmatprep.subr.mxu0 0.0
        %831 = vmatpush1.msra.mxu0 0.0
        %832 = vmatprep.subr.mxu0 0.0
        %833 = vmatpush1.msra.mxu0 0.0
        %834 = vmatprep.subr.mxu0 0.0
        %835 = vmatpush1.msra.mxu0 0.0
        %836 = vmatprep.subr.mxu0 0.0
        %837 = vmatpush1.msra.mxu0 0.0
        %838 = vmatprep.subr.mxu0 0.0
        %839 = vmatpush1.msra.mxu0 0.0
        %840 = vmatprep.subr.mxu0 0.0
        %841 = vmatpush1.msra.mxu0 0.0
        %842 = vmatprep.subr.mxu0 0.0
        %843 = vmatpush1.msra.mxu0 0.0
        %844 = vmatprep.subr.mxu0 0.0
        %845 = vmatpush1.msra.mxu0 0.0
        %846 = vmatprep.subr.mxu0 0.0
        %847 = vmatpush1.msra.mxu0 0.0
        %848 = vmatprep.subr.mxu0 0.0
        %849 = vmatpush1.msra.mxu0 0.0
        %850 = vmatprep.subr.mxu0 0.0
        %851 = vmatpush1.msra.mxu0 0.0
        %852 = vmatprep.subr.mxu0 0.0
        %853 = vmatpush1.msra.mxu0 0.0
        %854 = vmatprep.subr.mxu0 0.0
        %855 = vmatpush1.msra.mxu0 0.0
        %856 = vmatprep.subr.mxu0 0.0
        %857 = vmatpush1.msra.mxu0 0.0
        %858 = vmatprep.subr.mxu0 0.0
        %859 = vmatpush1.msra.mxu0 0.0
        %860 = vmatprep.subr.mxu0 0.0
        %861 = vmatpush1.msra.mxu0 0.0
        %862 = vmatprep.subr.mxu0 0.0
        %863 = vmatpush1.msra.mxu0 0.0
        %864 = vmatprep.subr.mxu0 0.0
        %865 = vmatpush1.msra.mxu0 0.0
        %866 = vmatprep.subr.mxu0 0.0
        %867 = vmatpush1.msra.mxu0 0.0
        %868 = vmatprep.mubr.f32.mxu0 0.0
        %v869 = vand.u32 %v800, 4294901760
        %v870 = vsub.f32 %v800, %v869
        %v871 = vand.u32 %v870, 4294901760
        %v872 = vsub.f32 %v870, %v871
        %v873 = vand.u32 %v872, 4294901760
        %874 = vmatmul.mubr.f32.gmra.mrb[0].mxu0 %v873
        %v875 = vpop.f32.mrb[0].mxu0
        %v876 = vadd.f32 0.0, %v875
        %v877 = vpop.f32.mrb[0].mxu0
        %878 = vdwg.mxu0
        %879 = vmatprep.subr.mxu0 0.0
        %v880 = vand.u32 %v777, 4294901760
        %v881 = vsub.f32 %v777, %v880
        %v882 = vand.u32 %v881, 4294901760
        %v883 = vsub.f32 %v881, %v882
        %v884 = vand.u32 %v883, 4294901760
        %885 = vmatpush1.msra.mxu0 %v884
        %886 = vmatprep.subr.mxu0 0.0
        %v887 = vand.u32 %v783, 4294901760
        %v888 = vsub.f32 %v783, %v887
        %v889 = vand.u32 %v888, 4294901760
        %v890 = vsub.f32 %v888, %v889
        %v891 = vand.u32 %v890, 4294901760
        %892 = vmatpush1.msra.mxu0 %v891
        %893 = vmatprep.subr.mxu0 0.0
        %894 = vmatpush1.msra.mxu0 0.0
        %895 = vmatprep.subr.mxu0 0.0
        %896 = vmatpush1.msra.mxu0 0.0
        %897 = vmatprep.subr.mxu0 0.0
        %898 = vmatpush1.msra.mxu0 0.0
        %899 = vmatprep.subr.mxu0 0.0
        %900 = vmatpush1.msra.mxu0 0.0
        %901 = vmatprep.subr.mxu0 0.0
        %902 = vmatpush1.msra.mxu0 0.0
        %903 = vmatprep.subr.mxu0 0.0
        %904 = vmatpush1.msra.mxu0 0.0
        %905 = vmatprep.subr.mxu0 0.0
        %906 = vmatpush1.msra.mxu0 0.0
        %907 = vmatprep.subr.mxu0 0.0
        %908 = vmatpush1.msra.mxu0 0.0
        %909 = vmatprep.subr.mxu0 0.0
        %910 = vmatpush1.msra.mxu0 0.0
        %911 = vmatprep.subr.mxu0 0.0
        %912 = vmatpush1.msra.mxu0 0.0
        %913 = vmatprep.subr.mxu0 0.0
        %914 = vmatpush1.msra.mxu0 0.0
        %915 = vmatprep.subr.mxu0 0.0
        %916 = vmatpush1.msra.mxu0 0.0
        %917 = vmatprep.subr.mxu0 0.0
        %918 = vmatpush1.msra.mxu0 0.0
        %919 = vmatprep.subr.mxu0 0.0
        %920 = vmatpush1.msra.mxu0 0.0
        %921 = vmatprep.subr.mxu0 0.0
        %922 = vmatpush1.msra.mxu0 0.0
        %923 = vmatprep.subr.mxu0 0.0
        %924 = vmatpush1.msra.mxu0 0.0
        %925 = vmatprep.subr.mxu0 0.0
        %926 = vmatpush1.msra.mxu0 0.0
        %927 = vmatprep.subr.mxu0 0.0
        %928 = vmatpush1.msra.mxu0 0.0
        %929 = vmatprep.subr.mxu0 0.0
        %930 = vmatpush1.msra.mxu0 0.0
        %931 = vmatprep.subr.mxu0 0.0
        %932 = vmatpush1.msra.mxu0 0.0
        %933 = vmatprep.subr.mxu0 0.0
        %934 = vmatpush1.msra.mxu0 0.0
        %935 = vmatprep.subr.mxu0 0.0
        %936 = vmatpush1.msra.mxu0 0.0
        %937 = vmatprep.subr.mxu0 0.0
        %938 = vmatpush1.msra.mxu0 0.0
        %939 = vmatprep.subr.mxu0 0.0
        %940 = vmatpush1.msra.mxu0 0.0
        %941 = vmatprep.subr.mxu0 0.0
        %942 = vmatpush1.msra.mxu0 0.0
        %943 = vmatprep.subr.mxu0 0.0
        %944 = vmatpush1.msra.mxu0 0.0
        %945 = vmatprep.subr.mxu0 0.0
        %946 = vmatpush1.msra.mxu0 0.0
        %947 = vmatprep.subr.mxu0 0.0
        %948 = vmatpush1.msra.mxu0 0.0
        %949 = vmatprep.subr.mxu0 0.0
        %950 = vmatpush1.msra.mxu0 0.0
        %951 = vmatprep.subr.mxu0 0.0
        %952 = vmatpush1.msra.mxu0 0.0
        %953 = vmatprep.mubr.f32.mxu0 0.0
        %v954 = vand.u32 %v800, 4294901760
        %955 = vmatmul.mubr.f32.gmra.mrb[0].mxu0 %v954
        %v956 = vpop.f32.mrb[0].mxu0
        %v957 = vadd.f32 %v876, %v956
        %v958 = vpop.f32.mrb[0].mxu0
        %959 = vdwg.mxu0
        %960 = vmatprep.subr.mxu0 0.0
        %v961 = vand.u32 %v777, 4294901760
        %v962 = vsub.f32 %v777, %v961
        %963 = vmatpush1.msra.mxu0 %v962
        %964 = vmatprep.subr.mxu0 0.0
        %v965 = vand.u32 %v783, 4294901760
        %v966 = vsub.f32 %v783, %v965
        %967 = vmatpush1.msra.mxu0 %v966
        %968 = vmatprep.subr.mxu0 0.0
        %969 = vmatpush1.msra.mxu0 0.0
        %970 = vmatprep.subr.mxu0 0.0
        %971 = vmatpush1.msra.mxu0 0.0
        %972 = vmatprep.subr.mxu0 0.0
        %973 = vmatpush1.msra.mxu0 0.0
        %974 = vmatprep.subr.mxu0 0.0
        %975 = vmatpush1.msra.mxu0 0.0
        %976 = vmatprep.subr.mxu0 0.0
        %977 = vmatpush1.msra.mxu0 0.0
        %978 = vmatprep.subr.mxu0 0.0
        %979 = vmatpush1.msra.mxu0 0.0
        %980 = vmatprep.subr.mxu0 0.0
        %981 = vmatpush1.msra.mxu0 0.0
        %982 = vmatprep.subr.mxu0 0.0
        %983 = vmatpush1.msra.mxu0 0.0
        %984 = vmatprep.subr.mxu0 0.0
        %985 = vmatpush1.msra.mxu0 0.0
        %986 = vmatprep.subr.mxu0 0.0
        %987 = vmatpush1.msra.mxu0 0.0
        %988 = vmatprep.subr.mxu0 0.0
        %989 = vmatpush1.msra.mxu0 0.0
        %990 = vmatprep.subr.mxu0 0.0
        %991 = vmatpush1.msra.mxu0 0.0
        %992 = vmatprep.subr.mxu0 0.0
        %993 = vmatpush1.msra.mxu0 0.0
        %994 = vmatprep.subr.mxu0 0.0
        %995 = vmatpush1.msra.mxu0 0.0
        %996 = vmatprep.subr.mxu0 0.0
        %997 = vmatpush1.msra.mxu0 0.0
        %998 = vmatprep.subr.mxu0 0.0
        %999 = vmatpush1.msra.mxu0 0.0
        %1000 = vmatprep.subr.mxu0 0.0
        %1001 = vmatpush1.msra.mxu0 0.0
        %1002 = vmatprep.subr.mxu0 0.0
        %1003 = vmatpush1.msra.mxu0 0.0
        %1004 = vmatprep.subr.mxu0 0.0
        %1005 = vmatpush1.msra.mxu0 0.0
        %1006 = vmatprep.subr.mxu0 0.0
        %1007 = vmatpush1.msra.mxu0 0.0
        %1008 = vmatprep.subr.mxu0 0.0
        %1009 = vmatpush1.msra.mxu0 0.0
        %1010 = vmatprep.subr.mxu0 0.0
        %1011 = vmatpush1.msra.mxu0 0.0
        %1012 = vmatprep.subr.mxu0 0.0
        %1013 = vmatpush1.msra.mxu0 0.0
        %1014 = vmatprep.subr.mxu0 0.0
        %1015 = vmatpush1.msra.mxu0 0.0
        %1016 = vmatprep.subr.mxu0 0.0
        %1017 = vmatpush1.msra.mxu0 0.0
        %1018 = vmatprep.subr.mxu0 0.0
        %1019 = vmatpush1.msra.mxu0 0.0
        %1020 = vmatprep.subr.mxu0 0.0
        %1021 = vmatpush1.msra.mxu0 0.0
        %1022 = vmatprep.subr.mxu0 0.0
        %1023 = vmatpush1.msra.mxu0 0.0
        %1024 = vmatprep.subr.mxu0 0.0
        %1025 = vmatpush1.msra.mxu0 0.0
        %1026 = vmatprep.subr.mxu0 0.0
        %1027 = vmatpush1.msra.mxu0 0.0
        %1028 = vmatprep.mubr.f32.mxu0 0.0
        %v1029 = vand.u32 %v800, 4294901760
        %v1030 = vsub.f32 %v800, %v1029
        %1031 = vmatmul.mubr.f32.gmra.mrb[0].mxu0 %v1030
        %v1032 = vpop.f32.mrb[0].mxu0
        %v1033 = vadd.f32 %v957, %v1032
        %v1034 = vpop.f32.mrb[0].mxu0
        %1035 = vdwg.mxu0
        %1036 = vmatprep.subr.mxu0 0.0
        %v1037 = vand.u32 %v777, 4294901760
        %1038 = vmatpush1.msra.mxu0 %v1037
        %1039 = vmatprep.subr.mxu0 0.0
        %v1040 = vand.u32 %v783, 4294901760
        %1041 = vmatpush1.msra.mxu0 %v1040
        %1042 = vmatprep.subr.mxu0 0.0
        %1043 = vmatpush1.msra.mxu0 0.0
        %1044 = vmatprep.subr.mxu0 0.0
        %1045 = vmatpush1.msra.mxu0 0.0
        %1046 = vmatprep.subr.mxu0 0.0
        %1047 = vmatpush1.msra.mxu0 0.0
        %1048 = vmatprep.subr.mxu0 0.0
        %1049 = vmatpush1.msra.mxu0 0.0
        %1050 = vmatprep.subr.mxu0 0.0
        %1051 = vmatpush1.msra.mxu0 0.0
        %1052 = vmatprep.subr.mxu0 0.0
        %1053 = vmatpush1.msra.mxu0 0.0
        %1054 = vmatprep.subr.mxu0 0.0
        %1055 = vmatpush1.msra.mxu0 0.0
        %1056 = vmatprep.subr.mxu0 0.0
        %1057 = vmatpush1.msra.mxu0 0.0
        %1058 = vmatprep.subr.mxu0 0.0
        %1059 = vmatpush1.msra.mxu0 0.0
        %1060 = vmatprep.subr.mxu0 0.0
        %1061 = vmatpush1.msra.mxu0 0.0
        %1062 = vmatprep.subr.mxu0 0.0
        %1063 = vmatpush1.msra.mxu0 0.0
        %1064 = vmatprep.subr.mxu0 0.0
        %1065 = vmatpush1.msra.mxu0 0.0
        %1066 = vmatprep.subr.mxu0 0.0
        %1067 = vmatpush1.msra.mxu0 0.0
        %1068 = vmatprep.subr.mxu0 0.0
        %1069 = vmatpush1.msra.mxu0 0.0
        %1070 = vmatprep.subr.mxu0 0.0
        %1071 = vmatpush1.msra.mxu0 0.0
        %1072 = vmatprep.subr.mxu0 0.0
        %1073 = vmatpush1.msra.mxu0 0.0
        %1074 = vmatprep.subr.mxu0 0.0
        %1075 = vmatpush1.msra.mxu0 0.0
        %1076 = vmatprep.subr.mxu0 0.0
        %1077 = vmatpush1.msra.mxu0 0.0
        %1078 = vmatprep.subr.mxu0 0.0
        %1079 = vmatpush1.msra.mxu0 0.0
        %1080 = vmatprep.subr.mxu0 0.0
        %1081 = vmatpush1.msra.mxu0 0.0
        %1082 = vmatprep.subr.mxu0 0.0
        %1083 = vmatpush1.msra.mxu0 0.0
        %1084 = vmatprep.subr.mxu0 0.0
        %1085 = vmatpush1.msra.mxu0 0.0
        %1086 = vmatprep.subr.mxu0 0.0
        %1087 = vmatpush1.msra.mxu0 0.0
        %1088 = vmatprep.subr.mxu0 0.0
        %1089 = vmatpush1.msra.mxu0 0.0
        %1090 = vmatprep.subr.mxu0 0.0
        %1091 = vmatpush1.msra.mxu0 0.0
        %1092 = vmatprep.subr.mxu0 0.0
        %1093 = vmatpush1.msra.mxu0 0.0
        %1094 = vmatprep.subr.mxu0 0.0
        %1095 = vmatpush1.msra.mxu0 0.0
        %1096 = vmatprep.subr.mxu0 0.0
        %1097 = vmatpush1.msra.mxu0 0.0
        %1098 = vmatprep.subr.mxu0 0.0
        %1099 = vmatpush1.msra.mxu0 0.0
        %1100 = vmatprep.subr.mxu0 0.0
        %1101 = vmatpush1.msra.mxu0 0.0
        %1102 = vmatprep.mubr.f32.mxu0 0.0
        %v1103 = vand.u32 %v800, 4294901760
        %v1104 = vsub.f32 %v800, %v1103
        %v1105 = vand.u32 %v1104, 4294901760
        %1106 = vmatmul.mubr.f32.gmra.mrb[0].mxu0 %v1105
        %v1107 = vpop.f32.mrb[0].mxu0
        %v1108 = vadd.f32 %v1033, %v1107
        %v1109 = vpop.f32.mrb[0].mxu0
        %1110 = vdwg.mxu0
        %1111 = vmatprep.subr.mxu0 0.0
        %v1112 = vand.u32 %v777, 4294901760
        %v1113 = vsub.f32 %v777, %v1112
        %v1114 = vand.u32 %v1113, 4294901760
        %1115 = vmatpush1.msra.mxu0 %v1114
        %1116 = vmatprep.subr.mxu0 0.0
        %v1117 = vand.u32 %v783, 4294901760
        %v1118 = vsub.f32 %v783, %v1117
        %v1119 = vand.u32 %v1118, 4294901760
        %1120 = vmatpush1.msra.mxu0 %v1119
        %1121 = vmatprep.subr.mxu0 0.0
        %1122 = vmatpush1.msra.mxu0 0.0
        %1123 = vmatprep.subr.mxu0 0.0
        %1124 = vmatpush1.msra.mxu0 0.0
        %1125 = vmatprep.subr.mxu0 0.0
        %1126 = vmatpush1.msra.mxu0 0.0
        %1127 = vmatprep.subr.mxu0 0.0
        %1128 = vmatpush1.msra.mxu0 0.0
        %1129 = vmatprep.subr.mxu0 0.0
        %1130 = vmatpush1.msra.mxu0 0.0
        %1131 = vmatprep.subr.mxu0 0.0
        %1132 = vmatpush1.msra.mxu0 0.0
        %1133 = vmatprep.subr.mxu0 0.0
        %1134 = vmatpush1.msra.mxu0 0.0
        %1135 = vmatprep.subr.mxu0 0.0
        %1136 = vmatpush1.msra.mxu0 0.0
        %1137 = vmatprep.subr.mxu0 0.0
        %1138 = vmatpush1.msra.mxu0 0.0
        %1139 = vmatprep.subr.mxu0 0.0
        %1140 = vmatpush1.msra.mxu0 0.0
        %1141 = vmatprep.subr.mxu0 0.0
        %1142 = vmatpush1.msra.mxu0 0.0
        %1143 = vmatprep.subr.mxu0 0.0
        %1144 = vmatpush1.msra.mxu0 0.0
        %1145 = vmatprep.subr.mxu0 0.0
        %1146 = vmatpush1.msra.mxu0 0.0
        %1147 = vmatprep.subr.mxu0 0.0
        %1148 = vmatpush1.msra.mxu0 0.0
        %1149 = vmatprep.subr.mxu0 0.0
        %1150 = vmatpush1.msra.mxu0 0.0
        %1151 = vmatprep.subr.mxu0 0.0
        %1152 = vmatpush1.msra.mxu0 0.0
        %1153 = vmatprep.subr.mxu0 0.0
        %1154 = vmatpush1.msra.mxu0 0.0
        %1155 = vmatprep.subr.mxu0 0.0
        %1156 = vmatpush1.msra.mxu0 0.0
        %1157 = vmatprep.subr.mxu0 0.0
        %1158 = vmatpush1.msra.mxu0 0.0
        %1159 = vmatprep.subr.mxu0 0.0
        %1160 = vmatpush1.msra.mxu0 0.0
        %1161 = vmatprep.subr.mxu0 0.0
        %1162 = vmatpush1.msra.mxu0 0.0
        %1163 = vmatprep.subr.mxu0 0.0
        %1164 = vmatpush1.msra.mxu0 0.0
        %1165 = vmatprep.subr.mxu0 0.0
        %1166 = vmatpush1.msra.mxu0 0.0
        %1167 = vmatprep.subr.mxu0 0.0
        %1168 = vmatpush1.msra.mxu0 0.0
        %1169 = vmatprep.subr.mxu0 0.0
        %1170 = vmatpush1.msra.mxu0 0.0
        %1171 = vmatprep.subr.mxu0 0.0
        %1172 = vmatpush1.msra.mxu0 0.0
        %1173 = vmatprep.subr.mxu0 0.0
        %1174 = vmatpush1.msra.mxu0 0.0
        %1175 = vmatprep.subr.mxu0 0.0
        %1176 = vmatpush1.msra.mxu0 0.0
        %1177 = vmatprep.subr.mxu0 0.0
        %1178 = vmatpush1.msra.mxu0 0.0
        %1179 = vmatprep.subr.mxu0 0.0
        %1180 = vmatpush1.msra.mxu0 0.0
        %1181 = vmatprep.mubr.f32.mxu0 0.0
        %v1182 = vand.u32 %v800, 4294901760
        %1183 = vmatmul.mubr.f32.gmra.mrb[0].mxu0 %v1182
        %v1184 = vpop.f32.mrb[0].mxu0
        %v1185 = vadd.f32 %v1108, %v1184
        %v1186 = vpop.f32.mrb[0].mxu0
        %1187 = vdwg.mxu0
        %1188 = vmatprep.subr.mxu0 0.0
        %v1189 = vand.u32 %v777, 4294901760
        %1190 = vmatpush1.msra.mxu0 %v1189
        %1191 = vmatprep.subr.mxu0 0.0
        %v1192 = vand.u32 %v783, 4294901760
        %1193 = vmatpush1.msra.mxu0 %v1192
        %1194 = vmatprep.subr.mxu0 0.0
        %1195 = vmatpush1.msra.mxu0 0.0
        %1196 = vmatprep.subr.mxu0 0.0
        %1197 = vmatpush1.msra.mxu0 0.0
        %1198 = vmatprep.subr.mxu0 0.0
        %1199 = vmatpush1.msra.mxu0 0.0
        %1200 = vmatprep.subr.mxu0 0.0
        %1201 = vmatpush1.msra.mxu0 0.0
        %1202 = vmatprep.subr.mxu0 0.0
        %1203 = vmatpush1.msra.mxu0 0.0
        %1204 = vmatprep.subr.mxu0 0.0
        %1205 = vmatpush1.msra.mxu0 0.0
        %1206 = vmatprep.subr.mxu0 0.0
        %1207 = vmatpush1.msra.mxu0 0.0
        %1208 = vmatprep.subr.mxu0 0.0
        %1209 = vmatpush1.msra.mxu0 0.0
        %1210 = vmatprep.subr.mxu0 0.0
        %1211 = vmatpush1.msra.mxu0 0.0
        %1212 = vmatprep.subr.mxu0 0.0
        %1213 = vmatpush1.msra.mxu0 0.0
        %1214 = vmatprep.subr.mxu0 0.0
        %1215 = vmatpush1.msra.mxu0 0.0
        %1216 = vmatprep.subr.mxu0 0.0
        %1217 = vmatpush1.msra.mxu0 0.0
        %1218 = vmatprep.subr.mxu0 0.0
        %1219 = vmatpush1.msra.mxu0 0.0
        %1220 = vmatprep.subr.mxu0 0.0
        %1221 = vmatpush1.msra.mxu0 0.0
        %1222 = vmatprep.subr.mxu0 0.0
        %1223 = vmatpush1.msra.mxu0 0.0
        %1224 = vmatprep.subr.mxu0 0.0
        %1225 = vmatpush1.msra.mxu0 0.0
        %1226 = vmatprep.subr.mxu0 0.0
        %1227 = vmatpush1.msra.mxu0 0.0
        %1228 = vmatprep.subr.mxu0 0.0
        %1229 = vmatpush1.msra.mxu0 0.0
        %1230 = vmatprep.subr.mxu0 0.0
        %1231 = vmatpush1.msra.mxu0 0.0
        %1232 = vmatprep.subr.mxu0 0.0
        %1233 = vmatpush1.msra.mxu0 0.0
        %1234 = vmatprep.subr.mxu0 0.0
        %1235 = vmatpush1.msra.mxu0 0.0
        %1236 = vmatprep.subr.mxu0 0.0
        %1237 = vmatpush1.msra.mxu0 0.0
        %1238 = vmatprep.subr.mxu0 0.0
        %1239 = vmatpush1.msra.mxu0 0.0
        %1240 = vmatprep.subr.mxu0 0.0
        %1241 = vmatpush1.msra.mxu0 0.0
        %1242 = vmatprep.subr.mxu0 0.0
        %1243 = vmatpush1.msra.mxu0 0.0
        %1244 = vmatprep.subr.mxu0 0.0
        %1245 = vmatpush1.msra.mxu0 0.0
        %1246 = vmatprep.subr.mxu0 0.0
        %1247 = vmatpush1.msra.mxu0 0.0
        %1248 = vmatprep.subr.mxu0 0.0
        %1249 = vmatpush1.msra.mxu0 0.0
        %1250 = vmatprep.subr.mxu0 0.0
        %1251 = vmatpush1.msra.mxu0 0.0
        %1252 = vmatprep.subr.mxu0 0.0
        %1253 = vmatpush1.msra.mxu0 0.0
        %1254 = vmatprep.mubr.f32.mxu0 0.0
        %v1255 = vand.u32 %v800, 4294901760
        %1256 = vmatmul.mubr.f32.gmra.mrb[0].mxu0 %v1255
        %v1257 = vpop.f32.mrb[0].mxu0
        %v1258 = vadd.f32 %v1185, %v1257
        %v1259 = vpop.f32.mrb[0].mxu0
        %1260 = vdwg.mxu0
        %1261 = vmatprep.subr.mxu0 0.0
        %v1262 = vand.u32 %v789, 4294901760
        %1263 = vmatpush1.msra.mxu0 %v1262
        %1264 = vmatprep.subr.mxu0 0.0
        %v1265 = vand.u32 %v795, 4294901760
        %1266 = vmatpush1.msra.mxu0 %v1265
        %1267 = vmatprep.subr.mxu0 0.0
        %1268 = vmatpush1.msra.mxu0 0.0
        %1269 = vmatprep.subr.mxu0 0.0
        %1270 = vmatpush1.msra.mxu0 0.0
        %1271 = vmatprep.subr.mxu0 0.0
        %1272 = vmatpush1.msra.mxu0 0.0
        %1273 = vmatprep.subr.mxu0 0.0
        %1274 = vmatpush1.msra.mxu0 0.0
        %1275 = vmatprep.subr.mxu0 0.0
        %1276 = vmatpush1.msra.mxu0 0.0
        %1277 = vmatprep.subr.mxu0 0.0
        %1278 = vmatpush1.msra.mxu0 0.0
        %1279 = vmatprep.subr.mxu0 0.0
        %1280 = vmatpush1.msra.mxu0 0.0
        %1281 = vmatprep.subr.mxu0 0.0
        %1282 = vmatpush1.msra.mxu0 0.0
        %1283 = vmatprep.subr.mxu0 0.0
        %1284 = vmatpush1.msra.mxu0 0.0
        %1285 = vmatprep.subr.mxu0 0.0
        %1286 = vmatpush1.msra.mxu0 0.0
        %1287 = vmatprep.subr.mxu0 0.0
        %1288 = vmatpush1.msra.mxu0 0.0
        %1289 = vmatprep.subr.mxu0 0.0
        %1290 = vmatpush1.msra.mxu0 0.0
        %1291 = vmatprep.subr.mxu0 0.0
        %1292 = vmatpush1.msra.mxu0 0.0
        %1293 = vmatprep.subr.mxu0 0.0
        %1294 = vmatpush1.msra.mxu0 0.0
        %1295 = vmatprep.subr.mxu0 0.0
        %1296 = vmatpush1.msra.mxu0 0.0
        %1297 = vmatprep.subr.mxu0 0.0
        %1298 = vmatpush1.msra.mxu0 0.0
        %1299 = vmatprep.subr.mxu0 0.0
        %1300 = vmatpush1.msra.mxu0 0.0
        %1301 = vmatprep.subr.mxu0 0.0
        %1302 = vmatpush1.msra.mxu0 0.0
        %1303 = vmatprep.subr.mxu0 0.0
        %1304 = vmatpush1.msra.mxu0 0.0
        %1305 = vmatprep.subr.mxu0 0.0
        %1306 = vmatpush1.msra.mxu0 0.0
        %1307 = vmatprep.subr.mxu0 0.0
        %1308 = vmatpush1.msra.mxu0 0.0
        %1309 = vmatprep.subr.mxu0 0.0
        %1310 = vmatpush1.msra.mxu0 0.0
        %1311 = vmatprep.subr.mxu0 0.0
        %1312 = vmatpush1.msra.mxu0 0.0
        %1313 = vmatprep.subr.mxu0 0.0
        %1314 = vmatpush1.msra.mxu0 0.0
        %1315 = vmatprep.subr.mxu0 0.0
        %1316 = vmatpush1.msra.mxu0 0.0
        %1317 = vmatprep.subr.mxu0 0.0
        %1318 = vmatpush1.msra.mxu0 0.0
        %1319 = vmatprep.subr.mxu0 0.0
        %1320 = vmatpush1.msra.mxu0 0.0
        %1321 = vmatprep.subr.mxu0 0.0
        %1322 = vmatpush1.msra.mxu0 0.0
        %1323 = vmatprep.subr.mxu0 0.0
        %1324 = vmatpush1.msra.mxu0 0.0
        %1325 = vmatprep.subr.mxu0 0.0
        %1326 = vmatpush1.msra.mxu0 0.0
        %1327 = vmatprep.mubr.f32.mxu0 0.0
        %v1328 = vand.u32 %v800, 4294901760
        %v1329 = vsub.f32 %v800, %v1328
        %v1330 = vand.u32 %v1329, 4294901760
        %v1331 = vsub.f32 %v1329, %v1330
        %v1332 = vand.u32 %v1331, 4294901760
        %1333 = vmatmul.mubr.f32.gmra.mrb[0].mxu0 %v1332
        %v1334 = vpop.f32.mrb[0].mxu0
        %v1335 = vadd.f32 0.0, %v1334
        %v1336 = vpop.f32.mrb[0].mxu0
        %1337 = vdwg.mxu0
        %1338 = vmatprep.subr.mxu0 0.0
        %v1339 = vand.u32 %v789, 4294901760
        %v1340 = vsub.f32 %v789, %v1339
        %v1341 = vand.u32 %v1340, 4294901760
        %v1342 = vsub.f32 %v1340, %v1341
        %v1343 = vand.u32 %v1342, 4294901760
        %1344 = vmatpush1.msra.mxu0 %v1343
        %1345 = vmatprep.subr.mxu0 0.0
        %v1346 = vand.u32 %v795, 4294901760
        %v1347 = vsub.f32 %v795, %v1346
        %v1348 = vand.u32 %v1347, 4294901760
        %v1349 = vsub.f32 %v1347, %v1348
        %v1350 = vand.u32 %v1349, 4294901760
        %1351 = vmatpush1.msra.mxu0 %v1350
        %1352 = vmatprep.subr.mxu0 0.0
        %1353 = vmatpush1.msra.mxu0 0.0
        %1354 = vmatprep.subr.mxu0 0.0
        %1355 = vmatpush1.msra.mxu0 0.0
        %1356 = vmatprep.subr.mxu0 0.0
        %1357 = vmatpush1.msra.mxu0 0.0
        %1358 = vmatprep.subr.mxu0 0.0
        %1359 = vmatpush1.msra.mxu0 0.0
        %1360 = vmatprep.subr.mxu0 0.0
        %1361 = vmatpush1.msra.mxu0 0.0
        %1362 = vmatprep.subr.mxu0 0.0
        %1363 = vmatpush1.msra.mxu0 0.0
        %1364 = vmatprep.subr.mxu0 0.0
        %1365 = vmatpush1.msra.mxu0 0.0
        %1366 = vmatprep.subr.mxu0 0.0
        %1367 = vmatpush1.msra.mxu0 0.0
        %1368 = vmatprep.subr.mxu0 0.0
        %1369 = vmatpush1.msra.mxu0 0.0
        %1370 = vmatprep.subr.mxu0 0.0
        %1371 = vmatpush1.msra.mxu0 0.0
        %1372 = vmatprep.subr.mxu0 0.0
        %1373 = vmatpush1.msra.mxu0 0.0
        %1374 = vmatprep.subr.mxu0 0.0
        %1375 = vmatpush1.msra.mxu0 0.0
        %1376 = vmatprep.subr.mxu0 0.0
        %1377 = vmatpush1.msra.mxu0 0.0
        %1378 = vmatprep.subr.mxu0 0.0
        %1379 = vmatpush1.msra.mxu0 0.0
        %1380 = vmatprep.subr.mxu0 0.0
        %1381 = vmatpush1.msra.mxu0 0.0
        %1382 = vmatprep.subr.mxu0 0.0
        %1383 = vmatpush1.msra.mxu0 0.0
        %1384 = vmatprep.subr.mxu0 0.0
        %1385 = vmatpush1.msra.mxu0 0.0
        %1386 = vmatprep.subr.mxu0 0.0
        %1387 = vmatpush1.msra.mxu0 0.0
        %1388 = vmatprep.subr.mxu0 0.0
        %1389 = vmatpush1.msra.mxu0 0.0
        %1390 = vmatprep.subr.mxu0 0.0
        %1391 = vmatpush1.msra.mxu0 0.0
        %1392 = vmatprep.subr.mxu0 0.0
        %1393 = vmatpush1.msra.mxu0 0.0
        %1394 = vmatprep.subr.mxu0 0.0
        %1395 = vmatpush1.msra.mxu0 0.0
        %1396 = vmatprep.subr.mxu0 0.0
        %1397 = vmatpush1.msra.mxu0 0.0
        %1398 = vmatprep.subr.mxu0 0.0
        %1399 = vmatpush1.msra.mxu0 0.0
        %1400 = vmatprep.subr.mxu0 0.0
        %1401 = vmatpush1.msra.mxu0 0.0
        %1402 = vmatprep.subr.mxu0 0.0
        %1403 = vmatpush1.msra.mxu0 0.0
        %1404 = vmatprep.subr.mxu0 0.0
        %1405 = vmatpush1.msra.mxu0 0.0
        %1406 = vmatprep.subr.mxu0 0.0
        %1407 = vmatpush1.msra.mxu0 0.0
        %1408 = vmatprep.subr.mxu0 0.0
        %1409 = vmatpush1.msra.mxu0 0.0
        %1410 = vmatprep.subr.mxu0 0.0
        %1411 = vmatpush1.msra.mxu0 0.0
        %1412 = vmatprep.mubr.f32.mxu0 0.0
        %v1413 = vand.u32 %v800, 4294901760
        %1414 = vmatmul.mubr.f32.gmra.mrb[0].mxu0 %v1413
        %v1415 = vpop.f32.mrb[0].mxu0
        %v1416 = vadd.f32 %v1335, %v1415
        %v1417 = vpop.f32.mrb[0].mxu0
        %1418 = vdwg.mxu0
        %1419 = vmatprep.subr.mxu0 0.0
        %v1420 = vand.u32 %v789, 4294901760
        %v1421 = vsub.f32 %v789, %v1420
        %1422 = vmatpush1.msra.mxu0 %v1421
        %1423 = vmatprep.subr.mxu0 0.0
        %v1424 = vand.u32 %v795, 4294901760
        %v1425 = vsub.f32 %v795, %v1424
        %1426 = vmatpush1.msra.mxu0 %v1425
        %1427 = vmatprep.subr.mxu0 0.0
        %1428 = vmatpush1.msra.mxu0 0.0
        %1429 = vmatprep.subr.mxu0 0.0
        %1430 = vmatpush1.msra.mxu0 0.0
        %1431 = vmatprep.subr.mxu0 0.0
        %1432 = vmatpush1.msra.mxu0 0.0
        %1433 = vmatprep.subr.mxu0 0.0
        %1434 = vmatpush1.msra.mxu0 0.0
        %1435 = vmatprep.subr.mxu0 0.0
        %1436 = vmatpush1.msra.mxu0 0.0
        %1437 = vmatprep.subr.mxu0 0.0
        %1438 = vmatpush1.msra.mxu0 0.0
        %1439 = vmatprep.subr.mxu0 0.0
        %1440 = vmatpush1.msra.mxu0 0.0
        %1441 = vmatprep.subr.mxu0 0.0
        %1442 = vmatpush1.msra.mxu0 0.0
        %1443 = vmatprep.subr.mxu0 0.0
        %1444 = vmatpush1.msra.mxu0 0.0
        %1445 = vmatprep.subr.mxu0 0.0
        %1446 = vmatpush1.msra.mxu0 0.0
        %1447 = vmatprep.subr.mxu0 0.0
        %1448 = vmatpush1.msra.mxu0 0.0
        %1449 = vmatprep.subr.mxu0 0.0
        %1450 = vmatpush1.msra.mxu0 0.0
        %1451 = vmatprep.subr.mxu0 0.0
        %1452 = vmatpush1.msra.mxu0 0.0
        %1453 = vmatprep.subr.mxu0 0.0
        %1454 = vmatpush1.msra.mxu0 0.0
        %1455 = vmatprep.subr.mxu0 0.0
        %1456 = vmatpush1.msra.mxu0 0.0
        %1457 = vmatprep.subr.mxu0 0.0
        %1458 = vmatpush1.msra.mxu0 0.0
        %1459 = vmatprep.subr.mxu0 0.0
        %1460 = vmatpush1.msra.mxu0 0.0
        %1461 = vmatprep.subr.mxu0 0.0
        %1462 = vmatpush1.msra.mxu0 0.0
        %1463 = vmatprep.subr.mxu0 0.0
        %1464 = vmatpush1.msra.mxu0 0.0
        %1465 = vmatprep.subr.mxu0 0.0
        %1466 = vmatpush1.msra.mxu0 0.0
        %1467 = vmatprep.subr.mxu0 0.0
        %1468 = vmatpush1.msra.mxu0 0.0
        %1469 = vmatprep.subr.mxu0 0.0
        %1470 = vmatpush1.msra.mxu0 0.0
        %1471 = vmatprep.subr.mxu0 0.0
        %1472 = vmatpush1.msra.mxu0 0.0
        %1473 = vmatprep.subr.mxu0 0.0
        %1474 = vmatpush1.msra.mxu0 0.0
        %1475 = vmatprep.subr.mxu0 0.0
        %1476 = vmatpush1.msra.mxu0 0.0
        %1477 = vmatprep.subr.mxu0 0.0
        %1478 = vmatpush1.msra.mxu0 0.0
        %1479 = vmatprep.subr.mxu0 0.0
        %1480 = vmatpush1.msra.mxu0 0.0
        %1481 = vmatprep.subr.mxu0 0.0
        %1482 = vmatpush1.msra.mxu0 0.0
        %1483 = vmatprep.subr.mxu0 0.0
        %1484 = vmatpush1.msra.mxu0 0.0
        %1485 = vmatprep.subr.mxu0 0.0
        %1486 = vmatpush1.msra.mxu0 0.0
        %1487 = vmatprep.mubr.f32.mxu0 0.0
        %v1488 = vand.u32 %v800, 4294901760
        %v1489 = vsub.f32 %v800, %v1488
        %1490 = vmatmul.mubr.f32.gmra.mrb[0].mxu0 %v1489
        %v1491 = vpop.f32.mrb[0].mxu0
        %v1492 = vadd.f32 %v1416, %v1491
        %v1493 = vpop.f32.mrb[0].mxu0
        %1494 = vdwg.mxu0
        %1495 = vmatprep.subr.mxu0 0.0
        %v1496 = vand.u32 %v789, 4294901760
        %1497 = vmatpush1.msra.mxu0 %v1496
        %1498 = vmatprep.subr.mxu0 0.0
        %v1499 = vand.u32 %v795, 4294901760
        %1500 = vmatpush1.msra.mxu0 %v1499
        %1501 = vmatprep.subr.mxu0 0.0
        %1502 = vmatpush1.msra.mxu0 0.0
        %1503 = vmatprep.subr.mxu0 0.0
        %1504 = vmatpush1.msra.mxu0 0.0
        %1505 = vmatprep.subr.mxu0 0.0
        %1506 = vmatpush1.msra.mxu0 0.0
        %1507 = vmatprep.subr.mxu0 0.0
        %1508 = vmatpush1.msra.mxu0 0.0
        %1509 = vmatprep.subr.mxu0 0.0
        %1510 = vmatpush1.msra.mxu0 0.0
        %1511 = vmatprep.subr.mxu0 0.0
        %1512 = vmatpush1.msra.mxu0 0.0
        %1513 = vmatprep.subr.mxu0 0.0
        %1514 = vmatpush1.msra.mxu0 0.0
        %1515 = vmatprep.subr.mxu0 0.0
        %1516 = vmatpush1.msra.mxu0 0.0
        %1517 = vmatprep.subr.mxu0 0.0
        %1518 = vmatpush1.msra.mxu0 0.0
        %1519 = vmatprep.subr.mxu0 0.0
        %1520 = vmatpush1.msra.mxu0 0.0
        %1521 = vmatprep.subr.mxu0 0.0
        %1522 = vmatpush1.msra.mxu0 0.0
        %1523 = vmatprep.subr.mxu0 0.0
        %1524 = vmatpush1.msra.mxu0 0.0
        %1525 = vmatprep.subr.mxu0 0.0
        %1526 = vmatpush1.msra.mxu0 0.0
        %1527 = vmatprep.subr.mxu0 0.0
        %1528 = vmatpush1.msra.mxu0 0.0
        %1529 = vmatprep.subr.mxu0 0.0
        %1530 = vmatpush1.msra.mxu0 0.0
        %1531 = vmatprep.subr.mxu0 0.0
        %1532 = vmatpush1.msra.mxu0 0.0
        %1533 = vmatprep.subr.mxu0 0.0
        %1534 = vmatpush1.msra.mxu0 0.0
        %1535 = vmatprep.subr.mxu0 0.0
        %1536 = vmatpush1.msra.mxu0 0.0
        %1537 = vmatprep.subr.mxu0 0.0
        %1538 = vmatpush1.msra.mxu0 0.0
        %1539 = vmatprep.subr.mxu0 0.0
        %1540 = vmatpush1.msra.mxu0 0.0
        %1541 = vmatprep.subr.mxu0 0.0
        %1542 = vmatpush1.msra.mxu0 0.0
        %1543 = vmatprep.subr.mxu0 0.0
        %1544 = vmatpush1.msra.mxu0 0.0
        %1545 = vmatprep.subr.mxu0 0.0
        %1546 = vmatpush1.msra.mxu0 0.0
        %1547 = vmatprep.subr.mxu0 0.0
        %1548 = vmatpush1.msra.mxu0 0.0
        %1549 = vmatprep.subr.mxu0 0.0
        %1550 = vmatpush1.msra.mxu0 0.0
        %1551 = vmatprep.subr.mxu0 0.0
        %1552 = vmatpush1.msra.mxu0 0.0
        %1553 = vmatprep.subr.mxu0 0.0
        %1554 = vmatpush1.msra.mxu0 0.0
        %1555 = vmatprep.subr.mxu0 0.0
        %1556 = vmatpush1.msra.mxu0 0.0
        %1557 = vmatprep.subr.mxu0 0.0
        %1558 = vmatpush1.msra.mxu0 0.0
        %1559 = vmatprep.subr.mxu0 0.0
        %1560 = vmatpush1.msra.mxu0 0.0
        %1561 = vmatprep.mubr.f32.mxu0 0.0
        %v1562 = vand.u32 %v800, 4294901760
        %v1563 = vsub.f32 %v800, %v1562
        %v1564 = vand.u32 %v1563, 4294901760
        %1565 = vmatmul.mubr.f32.gmra.mrb[0].mxu0 %v1564
        %v1566 = vpop.f32.mrb[0].mxu0
        %v1567 = vadd.f32 %v1492, %v1566
        %v1568 = vpop.f32.mrb[0].mxu0
        %1569 = vdwg.mxu0
        %1570 = vmatprep.subr.mxu0 0.0
        %v1571 = vand.u32 %v789, 4294901760
        %v1572 = vsub.f32 %v789, %v1571
        %v1573 = vand.u32 %v1572, 4294901760
        %1574 = vmatpush1.msra.mxu0 %v1573
        %1575 = vmatprep.subr.mxu0 0.0
        %v1576 = vand.u32 %v795, 4294901760
        %v1577 = vsub.f32 %v795, %v1576
        %v1578 = vand.u32 %v1577, 4294901760
        %1579 = vmatpush1.msra.mxu0 %v1578
        %1580 = vmatprep.subr.mxu0 0.0
        %1581 = vmatpush1.msra.mxu0 0.0
        %1582 = vmatprep.subr.mxu0 0.0
        %1583 = vmatpush1.msra.mxu0 0.0
        %1584 = vmatprep.subr.mxu0 0.0
        %1585 = vmatpush1.msra.mxu0 0.0
        %1586 = vmatprep.subr.mxu0 0.0
        %1587 = vmatpush1.msra.mxu0 0.0
        %1588 = vmatprep.subr.mxu0 0.0
        %1589 = vmatpush1.msra.mxu0 0.0
        %1590 = vmatprep.subr.mxu0 0.0
        %1591 = vmatpush1.msra.mxu0 0.0
        %1592 = vmatprep.subr.mxu0 0.0
        %1593 = vmatpush1.msra.mxu0 0.0
        %1594 = vmatprep.subr.mxu0 0.0
        %1595 = vmatpush1.msra.mxu0 0.0
        %1596 = vmatprep.subr.mxu0 0.0
        %1597 = vmatpush1.msra.mxu0 0.0
        %1598 = vmatprep.subr.mxu0 0.0
        %1599 = vmatpush1.msra.mxu0 0.0
        %1600 = vmatprep.subr.mxu0 0.0
        %1601 = vmatpush1.msra.mxu0 0.0
        %1602 = vmatprep.subr.mxu0 0.0
        %1603 = vmatpush1.msra.mxu0 0.0
        %1604 = vmatprep.subr.mxu0 0.0
        %1605 = vmatpush1.msra.mxu0 0.0
        %1606 = vmatprep.subr.mxu0 0.0
        %1607 = vmatpush1.msra.mxu0 0.0
        %1608 = vmatprep.subr.mxu0 0.0
        %1609 = vmatpush1.msra.mxu0 0.0
        %1610 = vmatprep.subr.mxu0 0.0
        %1611 = vmatpush1.msra.mxu0 0.0
        %1612 = vmatprep.subr.mxu0 0.0
        %1613 = vmatpush1.msra.mxu0 0.0
        %1614 = vmatprep.subr.mxu0 0.0
        %1615 = vmatpush1.msra.mxu0 0.0
        %1616 = vmatprep.subr.mxu0 0.0
        %1617 = vmatpush1.msra.mxu0 0.0
        %1618 = vmatprep.subr.mxu0 0.0
        %1619 = vmatpush1.msra.mxu0 0.0
        %1620 = vmatprep.subr.mxu0 0.0
        %1621 = vmatpush1.msra.mxu0 0.0
        %1622 = vmatprep.subr.mxu0 0.0
        %1623 = vmatpush1.msra.mxu0 0.0
        %1624 = vmatprep.subr.mxu0 0.0
        %1625 = vmatpush1.msra.mxu0 0.0
        %1626 = vmatprep.subr.mxu0 0.0
        %1627 = vmatpush1.msra.mxu0 0.0
        %1628 = vmatprep.subr.mxu0 0.0
        %1629 = vmatpush1.msra.mxu0 0.0
        %1630 = vmatprep.subr.mxu0 0.0
        %1631 = vmatpush1.msra.mxu0 0.0
        %1632 = vmatprep.subr.mxu0 0.0
        %1633 = vmatpush1.msra.mxu0 0.0
        %1634 = vmatprep.subr.mxu0 0.0
        %1635 = vmatpush1.msra.mxu0 0.0
        %1636 = vmatprep.subr.mxu0 0.0
        %1637 = vmatpush1.msra.mxu0 0.0
        %1638 = vmatprep.subr.mxu0 0.0
        %1639 = vmatpush1.msra.mxu0 0.0
        %1640 = vmatprep.mubr.f32.mxu0 0.0
        %v1641 = vand.u32 %v800, 4294901760
        %1642 = vmatmul.mubr.f32.gmra.mrb[0].mxu0 %v1641
        %v1643 = vpop.f32.mrb[0].mxu0
        %v1644 = vadd.f32 %v1567, %v1643
        %v1645 = vpop.f32.mrb[0].mxu0
        %1646 = vdwg.mxu0
        %1647 = vmatprep.subr.mxu0 0.0
        %v1648 = vand.u32 %v789, 4294901760
        %1649 = vmatpush1.msra.mxu0 %v1648
        %1650 = vmatprep.subr.mxu0 0.0
        %v1651 = vand.u32 %v795, 4294901760
        %1652 = vmatpush1.msra.mxu0 %v1651
        %1653 = vmatprep.subr.mxu0 0.0
        %1654 = vmatpush1.msra.mxu0 0.0
        %1655 = vmatprep.subr.mxu0 0.0
        %1656 = vmatpush1.msra.mxu0 0.0
        %1657 = vmatprep.subr.mxu0 0.0
        %1658 = vmatpush1.msra.mxu0 0.0
        %1659 = vmatprep.subr.mxu0 0.0
        %1660 = vmatpush1.msra.mxu0 0.0
        %1661 = vmatprep.subr.mxu0 0.0
        %1662 = vmatpush1.msra.mxu0 0.0
        %1663 = vmatprep.subr.mxu0 0.0
        %1664 = vmatpush1.msra.mxu0 0.0
        %1665 = vmatprep.subr.mxu0 0.0
        %1666 = vmatpush1.msra.mxu0 0.0
        %1667 = vmatprep.subr.mxu0 0.0
        %1668 = vmatpush1.msra.mxu0 0.0
        %1669 = vmatprep.subr.mxu0 0.0
        %1670 = vmatpush1.msra.mxu0 0.0
        %1671 = vmatprep.subr.mxu0 0.0
        %1672 = vmatpush1.msra.mxu0 0.0
        %1673 = vmatprep.subr.mxu0 0.0
        %1674 = vmatpush1.msra.mxu0 0.0
        %1675 = vmatprep.subr.mxu0 0.0
        %1676 = vmatpush1.msra.mxu0 0.0
        %1677 = vmatprep.subr.mxu0 0.0
        %1678 = vmatpush1.msra.mxu0 0.0
        %1679 = vmatprep.subr.mxu0 0.0
        %1680 = vmatpush1.msra.mxu0 0.0
        %1681 = vmatprep.subr.mxu0 0.0
        %1682 = vmatpush1.msra.mxu0 0.0
        %1683 = vmatprep.subr.mxu0 0.0
        %1684 = vmatpush1.msra.mxu0 0.0
        %1685 = vmatprep.subr.mxu0 0.0
        %1686 = vmatpush1.msra.mxu0 0.0
        %1687 = vmatprep.subr.mxu0 0.0
        %1688 = vmatpush1.msra.mxu0 0.0
        %1689 = vmatprep.subr.mxu0 0.0
        %1690 = vmatpush1.msra.mxu0 0.0
        %1691 = vmatprep.subr.mxu0 0.0
        %1692 = vmatpush1.msra.mxu0 0.0
        %1693 = vmatprep.subr.mxu0 0.0
        %1694 = vmatpush1.msra.mxu0 0.0
        %1695 = vmatprep.subr.mxu0 0.0
        %1696 = vmatpush1.msra.mxu0 0.0
        %1697 = vmatprep.subr.mxu0 0.0
        %1698 = vmatpush1.msra.mxu0 0.0
        %1699 = vmatprep.subr.mxu0 0.0
        %1700 = vmatpush1.msra.mxu0 0.0
        %1701 = vmatprep.subr.mxu0 0.0
        %1702 = vmatpush1.msra.mxu0 0.0
        %1703 = vmatprep.subr.mxu0 0.0
        %1704 = vmatpush1.msra.mxu0 0.0
        %1705 = vmatprep.subr.mxu0 0.0
        %1706 = vmatpush1.msra.mxu0 0.0
        %1707 = vmatprep.subr.mxu0 0.0
        %1708 = vmatpush1.msra.mxu0 0.0
        %1709 = vmatprep.subr.mxu0 0.0
        %1710 = vmatpush1.msra.mxu0 0.0
        %1711 = vmatprep.subr.mxu0 0.0
        %1712 = vmatpush1.msra.mxu0 0.0
        %1713 = vmatprep.mubr.f32.mxu0 0.0
        %v1714 = vand.u32 %v800, 4294901760
        %1715 = vmatmul.mubr.f32.gmra.mrb[0].mxu0 %v1714
        %v1716 = vpop.f32.mrb[0].mxu0
        %v1717 = vadd.f32 %v1644, %v1716
        %v1718 = vpop.f32.mrb[0].mxu0
        %1719 = vdwg.mxu0
        %v1720 = vcombine.high %v1258, 0.0
        %v1722 = vunpack.c.l.s4 1983009808
        %v1723 = vunpack.c.0.s8 %v1722
        %v1724 = vlaneseq
        %v1725 = vshrl.u32 %v1724, 7
        %v1726 = vsub.s32 %v1723, %v1725
        %v1727 = vrot.slane %v1258, %v1726
        %v1729 = vunpack.c.l.s4 1983009808
        %v1730 = vunpack.c.0.s8 %v1729
        %v1731 = vlaneseq
        %v1732 = vshrl.u32 %v1731, 7
        %v1733 = vsub.s32 %v1730, %v1732
        %v1734 = vrot.slane %v1720, %v1733
        %v1735 = vcombine.high %v1717, 0.0
        %v1737 = vunpack.c.l.s4 1983009808
        %v1738 = vunpack.c.0.s8 %v1737
        %v1739 = vlaneseq
        %v1740 = vshrl.u32 %v1739, 7
        %v1741 = vsub.s32 %v1738, %v1740
        %v1742 = vrot.slane %v1717, %v1741
        %v1744 = vunpack.c.l.s4 1983009808
        %v1745 = vunpack.c.0.s8 %v1744
        %v1746 = vlaneseq
        %v1747 = vshrl.u32 %v1746, 7
        %v1748 = vsub.s32 %v1745, %v1747
        %v1749 = vrot.slane %v1735, %v1748
        %v1750 = vcombine.low %v1727, %v1742
        %v1751 = vcombine.high %v1727, %v1742
        %v1753 = vunpack.c.l.s4 1934713408
        %v1754 = vunpack.c.0.s8 %v1753
        %v1755 = vlaneseq
        %v1756 = vshrl.u32 %v1755, 7
        %v1757 = vsub.s32 %v1754, %v1756
        %v1758 = vrot.slane %v1750, %v1757
        %v1760 = vunpack.c.l.s4 1934713408
        %v1761 = vunpack.c.0.s8 %v1760
        %v1762 = vlaneseq
        %v1763 = vshrl.u32 %v1762, 7
        %v1764 = vsub.s32 %v1761, %v1763
        %v1765 = vrot.slane %v1751, %v1764
        %v1766 = vcombine.low %v1734, %v1749
        %v1767 = vcombine.high %v1734, %v1749
        %v1769 = vunpack.c.l.s4 1934713408
        %v1770 = vunpack.c.0.s8 %v1769
        %v1771 = vlaneseq
        %v1772 = vshrl.u32 %v1771, 7
        %v1773 = vsub.s32 %v1770, %v1772
        %v1774 = vrot.slane %v1766, %v1773
        %v1776 = vunpack.c.l.s4 1934713408
        %v1777 = vunpack.c.0.s8 %v1776
        %v1778 = vlaneseq
        %v1779 = vshrl.u32 %v1778, 7
        %v1780 = vsub.s32 %v1777, %v1779
        %v1781 = vrot.slane %v1767, %v1780
        %v1782 = vcombine.high %v1758, 0.0
        %v1783 = vcombine.high %v1765, 0.0
        %v1784 = vcombine.high %v1774, 0.0
        %v1785 = vcombine.high %v1781, 0.0
        %1787 = vrot.lane.b32.xlu0 %v1782, 8
        %v1788 = vpop.permute.xlu0 %1787
        %1791 = vrot.lane.b32.xlu0 %v1765, 16
        %v1792 = vpop.permute.xlu0 %1791
        %1795 = vrot.lane.b32.xlu0 %v1783, 24
        %v1796 = vpop.permute.xlu0 %1795
        %1799 = vrot.lane.b32.xlu0 %v1774, 32
        %v1800 = vpop.permute.xlu0 %1799
        %1803 = vrot.lane.b32.xlu0 %v1784, 40
        %v1804 = vpop.permute.xlu0 %1803
        %1807 = vrot.lane.b32.xlu0 %v1781, 48
        %v1808 = vpop.permute.xlu0 %1807
        %1811 = vrot.lane.b32.xlu0 %v1785, 56
        %v1812 = vpop.permute.xlu0 %1811
        %vm1814 = vcmask 64512
        %v1815 = vsel %vm1814, %v1758, %v1788
        %v1816 = vsel %vm197, %v1815, %v1792
        %vm1817 = vcmask 195584
        %v1818 = vsel %vm1817, %v1816, %v1796
        %vm1819 = vcmask 261120
        %v1820 = vsel %vm1819, %v1818, %v1800
        %vm1821 = vcmask 326656
        %v1822 = vsel %vm1821, %v1820, %v1804
        %vm1823 = vcmask 392192
        %v1824 = vsel %vm1823, %v1822, %v1808
        %vm1825 = vcmask 457728
        %v1826 = vsel %vm1825, %v1824, %v1812
        %vm1827 = vcmask 517120
        %1828 = vst.msk [vmem:[%s189] sm:$0x3] %vm1827, %v1826
        %s1829 = sand.u32 %s96, 1
        %s1830 = scalar_lea.sflag [#allocation4], %s1829
        %s1831 = sand.u32 %s96, 1
        %s1832 = smul.addr %s1831, 2
        %s1833 = scalar_lea.vmem [#allocation5], %s1832
        // Predicated region
        $region37: #{tpu_custom_call.1} parent=31 // pred_check
          %p1834 = pneg %p106
        $region38: #{tpu_custom_call.1} parent=31 // pred_check_branch
          %1836 = sbr.rel (%p1834) target = $region40
        $region39: #{tpu_custom_call.1} parent=31 // pred_region
          %s1838 = ssub.s32 32, 32
          %1839 = vsyncadd %s1830, %s1838
          %s1840 = smul.addr %s20, 32
          %s1841 = scalar_lea.hbm %s3, %s1840
          %s1843 = sshll.u32 %s1833, 4
          %s1844 = int_to_ptr.vmem [resolvable:$true] %s1843
          %1846 = dma.vmem_to_hbm [thread:$0]  %s1844, 32, %s1841, %s1830
        $region40: #{tpu_custom_call.1} parent=31 // pred_fallthru
          _
      $region32: #{tpu_custom_call.1} parent=5 // pred_fallthru
        _
      %p1847 = scmp.le.s32.totalorder 2, %s15
      // Predicated region
      $region41: #{tpu_custom_call.1} parent=5 // pred_check
        %p1848 = pneg %p1847
      $region42: #{tpu_custom_call.1} parent=5 // pred_check_branch
        %1850 = sbr.rel (%p1848) target = $region44
      $region43: #{tpu_custom_call.1} parent=5 // pred_region
        %s1851 = ssub.s32 %s15, 2
        // Predicated region
        $region45: #{tpu_custom_call.1} parent=43 // pred_check
          %p1852 = pneg %p112
        $region46: #{tpu_custom_call.1} parent=43 // pred_check_branch
          %1854 = sbr.rel (%p1852) target = $region48
        $region47: #{tpu_custom_call.1} parent=43 // pred_region
          %s1855 = sand.u32 %s97, 1
          %s1856 = scalar_lea.sflag [#allocation4], %s1855
          %s1857 = sand.u32 %s97, 1
          %s1858 = smul.addr %s1857, 2
          %s1859 = scalar_lea.vmem [#allocation5], %s1858
          %1860 = dma.done %s1856, 32
        $region48: #{tpu_custom_call.1} parent=43 // pred_fallthru
          _
      $region44: #{tpu_custom_call.1} parent=5 // pred_fallthru
        _
    $region6: #{tpu_custom_call.1} parent=1 // loop_footer
      %s19 = sadd.s32 1, %s15
    $region7: #{tpu_custom_call.1} parent=1 // loop_footer_branch
      %14 = sbr.rel target = $region3
    $region8: #{tpu_custom_call.1} parent=1 // loop_exit
      _
    %1861 = vsyncpa [#allocation3], 1
    %s1862 = scalar_lea.sflag [#allocation3], 1
    %1863 = vsyncpa %s1862, 1
    %1864 = vsyncpa [#allocation4], 1
    %s1865 = scalar_lea.sflag [#allocation4], 1
    %1866 = vsyncpa %s1865, 1

</llo_original>
